<compile_context>
chip_gen: v7x
topology: tpu7x:2x2x1
jax: 0.10.0
libtpu: 0.0.40
codegen_flags: <defaults>
</compile_context>

<pallas_src>
import math
import jax
import jax.numpy as jnp
from jax.experimental import pallas as pl
from jax.experimental.pallas import tpu as pltpu

D_MODEL = 32
N_HEADS = 4
D_K = D_MODEL // N_HEADS
SCALE = math.sqrt(D_K)


def mha_kernel(x_ref, wqkv_ref, wo_ref, bo_ref, o_ref):
    # x_ref:    (TB, S, 3*D)  -- [query | key | value] concatenated on lanes
    # wqkv_ref: (3*D, 3*D)    -- block-diag( (w_q/scale).T, w_k.T, w_v.T )
    # wo_ref:   (D, D)        -- w_o.T
    # bo_ref:   (1, D)
    # o_ref:    (TB, S*D)     -- lane-dense output block
    TB, S, D3 = x_ref.shape
    D = D3 // 3
    H = N_HEADS
    DK = D // H

    # ---- fused Q/K/V projection: ONE (TB*S, 3D) x (3D, 3D) MXU matmul --------
    x = x_ref[...].reshape(TB * S, D3)  # leading-dim merge only (cheap)
    qkv = jnp.dot(x, wqkv_ref[...], preferred_element_type=jnp.float32)  # (TB*S, 3D)

    # ---- per-head scaled dot-product attention (H heads, statically unrolled) -
    # The per-head score / P@V matmuls are inherently per-head (contraction is
    # block-diagonal over heads), so they stay as tiny batched matmuls.  Heads are
    # picked out with static lane slices + leading-dim reshapes only (no 4-D
    # transposes / broadcasts in the kernel).
    # TODO(synk): optional `mask` argument not wired in (mask=None path only);
    # dropout / attention_dropout are identity in eval mode.
    head_outs = []
    for h in range(H):
        q_h = qkv[:, h * DK:(h + 1) * DK].reshape(TB, S, DK)
        k_h = qkv[:, D + h * DK: D + (h + 1) * DK].reshape(TB, S, DK)
        v_h = qkv[:, 2 * D + h * DK: 2 * D + (h + 1) * DK].reshape(TB, S, DK)
        s_h = jnp.einsum("bqd,bkd->bqk", q_h, k_h,
                         preferred_element_type=jnp.float32)          # (TB, S, S)
        m = jnp.max(s_h, axis=-1, keepdims=True)
        e = jnp.exp(s_h - m)
        # exact reciprocal keeps the 1e-4 tolerance (approx=True -> EUP if looser is ok)
        p = e * pl.reciprocal(jnp.sum(e, axis=-1, keepdims=True))
        head_outs.append(jnp.einsum("bqk,bkd->bqd", p, v_h,
                                    preferred_element_type=jnp.float32))  # (TB, S, DK)

    # concat(heads) in PyTorch order -> (TB, S, D)
    merged = jnp.concatenate(head_outs, axis=-1)

    # ---- output projection: ONE (TB*S, D) x (D, D) MXU matmul + bias ---------
    out = jnp.dot(merged.reshape(TB * S, D), wo_ref[...],
                  preferred_element_type=jnp.float32) + bo_ref[...]   # (TB*S, D)

    # ---- lane-dense store: (TB, S, D) -> (TB, S*D) ---------------------------
    # sublane->lane relayout via static slices + lane concat (XLU slack), so the
    # block store is unmasked (S*D is a multiple of 128 at these sizes).
    out3 = out.reshape(TB, S, D)
    dense = jnp.concatenate([out3[:, s, :] for s in range(S)], axis=-1)  # (TB, S*D)
    o_ref[...] = dense.astype(o_ref.dtype)


def multi_head_attention(query, key, value, w_q, w_k, w_v, w_o, b_o):
    B, S, D = query.shape
    assert D == D_MODEL and D % N_HEADS == 0

    # Host-side weight prep (layout plumbing only, hoisted out of the kernel):
    # block-diagonal fused projection weight, attention scale folded into Q block.
    w_big = jnp.zeros((3 * D, 3 * D), jnp.float32)
    w_big = w_big.at[0:D, 0:D].set((w_q / SCALE).T)
    w_big = w_big.at[D:2 * D, D:2 * D].set(w_k.T)
    w_big = w_big.at[2 * D:3 * D, 2 * D:3 * D].set(w_v.T)
    # TODO(synk): if 3*d_model ever exceeds 128 (one MXU contraction tile), split
    # back into three separate (D, D) matmuls instead of the block-diagonal fuse.
    wo_t = w_o.T
    b2 = b_o.reshape(1, D)

    x_cat = jnp.concatenate([query, key, value], axis=-1)   # (B, S, 3D)

    # Grid: one fat step unless per-step work is large enough to amortize the
    # ~0.35us/step overhead AND give both v7x TensorCores real work.  v5e/v6e
    # have a single TC, so extra grid steps there are pure overhead.
    if B % 2 == 0 and B * S * D >= 32768:
        num_blocks = 2
    else:
        num_blocks = 1
    TB = B // num_blocks

    x_spec = pl.BlockSpec((TB, S, 3 * D), lambda b: (b, 0, 0))
    wqkv_spec = pl.BlockSpec((3 * D, 3 * D), lambda b: (0, 0))
    wo_spec = pl.BlockSpec((D, D), lambda b: (0, 0))
    b_spec = pl.BlockSpec((1, D), lambda b: (0, 0))
    out_spec = pl.BlockSpec((TB, S * D), lambda b: (b, 0))

    out = pl.pallas_call(
        mha_kernel,
        out_shape=jax.ShapeDtypeStruct((B, S * D), jnp.float32),
        grid_spec=pltpu.PrefetchScalarGridSpec(
            num_scalar_prefetch=0,
            grid=(num_blocks,),
            in_specs=[x_spec, wqkv_spec, wo_spec, b_spec],
            out_specs=out_spec,
        ),
        compiler_params=pltpu.CompilerParams(dimension_semantics=("parallel",)),
    )(x_cat, w_big, wo_t, b2)
    return out.reshape(B, S, D)


def reference_mha(query, key, value, w_q, w_k, w_v, w_o, b_o):
    # pure-JAX reference mirroring the PyTorch forward (eval mode, mask=None)
    B, S, D = query.shape
    Q = (query @ w_q.T).reshape(B, S, N_HEADS, D_K).transpose(0, 2, 1, 3)
    K = (key @ w_k.T).reshape(B, S, N_HEADS, D_K).transpose(0, 2, 1, 3)
    V = (value @ w_v.T).reshape(B, S, N_HEADS, D_K).transpose(0, 2, 1, 3)
    scores = jnp.einsum("bhqd,bhkd->bhqk", Q, K) / SCALE
    weights = jax.nn.softmax(scores, axis=-1)
    attn = jnp.einsum("bhqk,bhkd->bhqd", weights, V)
    attn = attn.transpose(0, 2, 1, 3).reshape(B, S, D)
    return attn @ w_o.T + b_o


if __name__ == "__main__":
    B, S, D = 2, 8, D_MODEL
    key = jax.random.PRNGKey(0)
    ks = jax.random.split(key, 8)

    # deterministic "Linear-like" init: uniform(-1/sqrt(fan_in), 1/sqrt(fan_in))
    bound = 1.0 / math.sqrt(D)
    w_q = jax.random.uniform(ks[0], (D, D), jnp.float32, -bound, bound)
    w_k = jax.random.uniform(ks[1], (D, D), jnp.float32, -bound, bound)
    w_v = jax.random.uniform(ks[2], (D, D), jnp.float32, -bound, bound)
    w_o = jax.random.uniform(ks[3], (D, D), jnp.float32, -bound, bound)
    b_o = jax.random.uniform(ks[4], (D,), jnp.float32, -bound, bound)

    query = jax.random.normal(ks[5], (B, S, D), jnp.float32)
    key_t = jax.random.normal(ks[6], (B, S, D), jnp.float32)
    value = jax.random.normal(ks[7], (B, S, D), jnp.float32)

    out = multi_head_attention(query, key_t, value, w_q, w_k, w_v, w_o, b_o)
    out = jax.block_until_ready(out)

    ref = reference_mha(query, key_t, value, w_q, w_k, w_v, w_o, b_o)
    assert out.shape == (B, S, D)
    assert jnp.allclose(out, ref, atol=1e-4, rtol=1e-4), "mismatch vs reference"

    print("KERNEL_OK")
</pallas_src>

<mosaic_0001>
module attributes {stable_mosaic.version = 11 : i64} {
  func.func @mha_kernel(%arg0: i32, %arg1: memref<2x8x96xf32, #tpu.memory_space<vmem>>, %arg2: memref<96x96xf32, #tpu.memory_space<vmem>>, %arg3: memref<32x32xf32, #tpu.memory_space<vmem>>, %arg4: memref<1x32xf32, #tpu.memory_space<vmem>>, %arg5: memref<2x256xf32, #tpu.memory_space<vmem>>) attributes {dimension_semantics = [#tpu.dimension_semantics<parallel>], iteration_bounds = array<i64: 1>, scalar_prefetch = 0 : i64, scratch_operands = 0 : i64, tpu.core_type = #tpu.core_type<tc>, window_params = [{transform_indices = @transform_0, window_bounds = array<i64: 2, 8, 96>}, {pipeline_mode = #tpu.pipeline_mode<synchronous>, transform_indices = @transform_1, window_bounds = array<i64: 96, 96>}, {pipeline_mode = #tpu.pipeline_mode<synchronous>, transform_indices = @transform_2, window_bounds = array<i64: 32, 32>}, {pipeline_mode = #tpu.pipeline_mode<synchronous>, transform_indices = @transform_3, window_bounds = array<i64: 1, 32>}, {transform_indices = @transform_4, window_bounds = array<i64: 2, 256>}]} {
    %c0 = arith.constant 0 : index
    %c0_0 = arith.constant 0 : index
    %c0_1 = arith.constant 0 : index
    %0 = vector.load %arg1[%c0, %c0_0, %c0_1] : memref<2x8x96xf32, #tpu.memory_space<vmem>>, vector<2x8x96xf32>
    %1 = vector.shape_cast %0 : vector<2x8x96xf32> to vector<16x96xf32>
    %c0_2 = arith.constant 0 : index
    %c0_3 = arith.constant 0 : index
    %2 = vector.load %arg2[%c0_2, %c0_3] : memref<96x96xf32, #tpu.memory_space<vmem>>, vector<96x96xf32>
    %cst = arith.constant dense<0.000000e+00> : vector<16x96xf32>
    %3 = tpu.matmul %1, %2, %cst {dimension_numbers = #tpu.dot_dimension_numbers<[1], [0], [0], [1], [0, 0, 1, 1], [], []>} : vector<16x96xf32>, vector<96x96xf32>, vector<16x96xf32> -> vector<16x96xf32>
    %4 = vector.extract_strided_slice %3 {offsets = [0, 0], sizes = [16, 8], strides = [1, 1]} : vector<16x96xf32> to vector<16x8xf32>
    %5 = vector.shape_cast %4 : vector<16x8xf32> to vector<2x8x8xf32>
    %6 = vector.extract_strided_slice %3 {offsets = [0, 32], sizes = [16, 8], strides = [1, 1]} : vector<16x96xf32> to vector<16x8xf32>
    %7 = vector.shape_cast %6 : vector<16x8xf32> to vector<2x8x8xf32>
    %8 = vector.extract_strided_slice %3 {offsets = [0, 64], sizes = [16, 8], strides = [1, 1]} : vector<16x96xf32> to vector<16x8xf32>
    %9 = vector.shape_cast %8 : vector<16x8xf32> to vector<2x8x8xf32>
    "tpu.trace_start"() <{level = 10 : i32, message = "bqd,bkd->bqk"}> : () -> ()
    %cst_4 = arith.constant dense<0.000000e+00> : vector<2x8x8xf32>
    %10 = tpu.matmul %5, %7, %cst_4 {dimension_numbers = #tpu.dot_dimension_numbers<[2], [2], [1], [1], [0, 0, 0, 1, 1, 1], [0], [0]>} : vector<2x8x8xf32>, vector<2x8x8xf32>, vector<2x8x8xf32> -> vector<2x8x8xf32>
    "tpu.trace_stop"() : () -> ()
    %cst_5 = arith.constant dense<0xFF800000> : vector<2x8xf32>
    %11 = vector.multi_reduction <maximumf>, %10, %cst_5 [2] : vector<2x8x8xf32> to vector<2x8xf32>
    %12 = vector.shape_cast %11 : vector<2x8xf32> to vector<2x8x1xf32>
    %13 = vector.broadcast %12 : vector<2x8x1xf32> to vector<2x8x8xf32>
    %14 = arith.subf %10, %13 : vector<2x8x8xf32>
    %15 = math.exp %14 : vector<2x8x8xf32>
    %cst_6 = arith.constant dense<0.000000e+00> : vector<2x8xf32>
    %16 = vector.multi_reduction <add>, %15, %cst_6 [2] : vector<2x8x8xf32> to vector<2x8xf32>
    %17 = vector.shape_cast %16 : vector<2x8xf32> to vector<2x8x1xf32>
    %18 = tpu.reciprocal %17 : vector<2x8x1xf32> -> vector<2x8x1xf32>
    %19 = vector.broadcast %18 : vector<2x8x1xf32> to vector<2x8x8xf32>
    %20 = arith.mulf %15, %19 : vector<2x8x8xf32>
    "tpu.trace_start"() <{level = 10 : i32, message = "bqk,bkd->bqd"}> : () -> ()
    %cst_7 = arith.constant dense<0.000000e+00> : vector<2x8x8xf32>
    %21 = tpu.matmul %20, %9, %cst_7 {dimension_numbers = #tpu.dot_dimension_numbers<[2], [1], [1], [2], [0, 0, 0, 1, 1, 2], [0], [0]>} : vector<2x8x8xf32>, vector<2x8x8xf32>, vector<2x8x8xf32> -> vector<2x8x8xf32>
    "tpu.trace_stop"() : () -> ()
    %22 = vector.extract_strided_slice %3 {offsets = [0, 8], sizes = [16, 8], strides = [1, 1]} : vector<16x96xf32> to vector<16x8xf32>
    %23 = vector.shape_cast %22 : vector<16x8xf32> to vector<2x8x8xf32>
    %24 = vector.extract_strided_slice %3 {offsets = [0, 40], sizes = [16, 8], strides = [1, 1]} : vector<16x96xf32> to vector<16x8xf32>
    %25 = vector.shape_cast %24 : vector<16x8xf32> to vector<2x8x8xf32>
    %26 = vector.extract_strided_slice %3 {offsets = [0, 72], sizes = [16, 8], strides = [1, 1]} : vector<16x96xf32> to vector<16x8xf32>
    %27 = vector.shape_cast %26 : vector<16x8xf32> to vector<2x8x8xf32>
    "tpu.trace_start"() <{level = 10 : i32, message = "bqd,bkd->bqk"}> : () -> ()
    %cst_8 = arith.constant dense<0.000000e+00> : vector<2x8x8xf32>
    %28 = tpu.matmul %23, %25, %cst_8 {dimension_numbers = #tpu.dot_dimension_numbers<[2], [2], [1], [1], [0, 0, 0, 1, 1, 1], [0], [0]>} : vector<2x8x8xf32>, vector<2x8x8xf32>, vector<2x8x8xf32> -> vector<2x8x8xf32>
    "tpu.trace_stop"() : () -> ()
    %cst_9 = arith.constant dense<0xFF800000> : vector<2x8xf32>
    %29 = vector.multi_reduction <maximumf>, %28, %cst_9 [2] : vector<2x8x8xf32> to vector<2x8xf32>
    %30 = vector.shape_cast %29 : vector<2x8xf32> to vector<2x8x1xf32>
    %31 = vector.broadcast %30 : vector<2x8x1xf32> to vector<2x8x8xf32>
    %32 = arith.subf %28, %31 : vector<2x8x8xf32>
    %33 = math.exp %32 : vector<2x8x8xf32>
    %cst_10 = arith.constant dense<0.000000e+00> : vector<2x8xf32>
    %34 = vector.multi_reduction <add>, %33, %cst_10 [2] : vector<2x8x8xf32> to vector<2x8xf32>
    %35 = vector.shape_cast %34 : vector<2x8xf32> to vector<2x8x1xf32>
    %36 = tpu.reciprocal %35 : vector<2x8x1xf32> -> vector<2x8x1xf32>
    %37 = vector.broadcast %36 : vector<2x8x1xf32> to vector<2x8x8xf32>
    %38 = arith.mulf %33, %37 : vector<2x8x8xf32>
    "tpu.trace_start"() <{level = 10 : i32, message = "bqk,bkd->bqd"}> : () -> ()
    %cst_11 = arith.constant dense<0.000000e+00> : vector<2x8x8xf32>
    %39 = tpu.matmul %38, %27, %cst_11 {dimension_numbers = #tpu.dot_dimension_numbers<[2], [1], [1], [2], [0, 0, 0, 1, 1, 2], [0], [0]>} : vector<2x8x8xf32>, vector<2x8x8xf32>, vector<2x8x8xf32> -> vector<2x8x8xf32>
    "tpu.trace_stop"() : () -> ()
    %40 = vector.extract_strided_slice %3 {offsets = [0, 16], sizes = [16, 8], strides = [1, 1]} : vector<16x96xf32> to vector<16x8xf32>
    %41 = vector.shape_cast %40 : vector<16x8xf32> to vector<2x8x8xf32>
    %42 = vector.extract_strided_slice %3 {offsets = [0, 48], sizes = [16, 8], strides = [1, 1]} : vector<16x96xf32> to vector<16x8xf32>
    %43 = vector.shape_cast %42 : vector<16x8xf32> to vector<2x8x8xf32>
    %44 = vector.extract_strided_slice %3 {offsets = [0, 80], sizes = [16, 8], strides = [1, 1]} : vector<16x96xf32> to vector<16x8xf32>
    %45 = vector.shape_cast %44 : vector<16x8xf32> to vector<2x8x8xf32>
    "tpu.trace_start"() <{level = 10 : i32, message = "bqd,bkd->bqk"}> : () -> ()
    %cst_12 = arith.constant dense<0.000000e+00> : vector<2x8x8xf32>
    %46 = tpu.matmul %41, %43, %cst_12 {dimension_numbers = #tpu.dot_dimension_numbers<[2], [2], [1], [1], [0, 0, 0, 1, 1, 1], [0], [0]>} : vector<2x8x8xf32>, vector<2x8x8xf32>, vector<2x8x8xf32> -> vector<2x8x8xf32>
    "tpu.trace_stop"() : () -> ()
    %cst_13 = arith.constant dense<0xFF800000> : vector<2x8xf32>
    %47 = vector.multi_reduction <maximumf>, %46, %cst_13 [2] : vector<2x8x8xf32> to vector<2x8xf32>
    %48 = vector.shape_cast %47 : vector<2x8xf32> to vector<2x8x1xf32>
    %49 = vector.broadcast %48 : vector<2x8x1xf32> to vector<2x8x8xf32>
    %50 = arith.subf %46, %49 : vector<2x8x8xf32>
    %51 = math.exp %50 : vector<2x8x8xf32>
    %cst_14 = arith.constant dense<0.000000e+00> : vector<2x8xf32>
    %52 = vector.multi_reduction <add>, %51, %cst_14 [2] : vector<2x8x8xf32> to vector<2x8xf32>
    %53 = vector.shape_cast %52 : vector<2x8xf32> to vector<2x8x1xf32>
    %54 = tpu.reciprocal %53 : vector<2x8x1xf32> -> vector<2x8x1xf32>
    %55 = vector.broadcast %54 : vector<2x8x1xf32> to vector<2x8x8xf32>
    %56 = arith.mulf %51, %55 : vector<2x8x8xf32>
    "tpu.trace_start"() <{level = 10 : i32, message = "bqk,bkd->bqd"}> : () -> ()
    %cst_15 = arith.constant dense<0.000000e+00> : vector<2x8x8xf32>
    %57 = tpu.matmul %56, %45, %cst_15 {dimension_numbers = #tpu.dot_dimension_numbers<[2], [1], [1], [2], [0, 0, 0, 1, 1, 2], [0], [0]>} : vector<2x8x8xf32>, vector<2x8x8xf32>, vector<2x8x8xf32> -> vector<2x8x8xf32>
    "tpu.trace_stop"() : () -> ()
    %58 = vector.extract_strided_slice %3 {offsets = [0, 24], sizes = [16, 8], strides = [1, 1]} : vector<16x96xf32> to vector<16x8xf32>
    %59 = vector.shape_cast %58 : vector<16x8xf32> to vector<2x8x8xf32>
    %60 = vector.extract_strided_slice %3 {offsets = [0, 56], sizes = [16, 8], strides = [1, 1]} : vector<16x96xf32> to vector<16x8xf32>
    %61 = vector.shape_cast %60 : vector<16x8xf32> to vector<2x8x8xf32>
    %62 = vector.extract_strided_slice %3 {offsets = [0, 88], sizes = [16, 8], strides = [1, 1]} : vector<16x96xf32> to vector<16x8xf32>
    %63 = vector.shape_cast %62 : vector<16x8xf32> to vector<2x8x8xf32>
    "tpu.trace_start"() <{level = 10 : i32, message = "bqd,bkd->bqk"}> : () -> ()
    %cst_16 = arith.constant dense<0.000000e+00> : vector<2x8x8xf32>
    %64 = tpu.matmul %59, %61, %cst_16 {dimension_numbers = #tpu.dot_dimension_numbers<[2], [2], [1], [1], [0, 0, 0, 1, 1, 1], [0], [0]>} : vector<2x8x8xf32>, vector<2x8x8xf32>, vector<2x8x8xf32> -> vector<2x8x8xf32>
    "tpu.trace_stop"() : () -> ()
    %cst_17 = arith.constant dense<0xFF800000> : vector<2x8xf32>
    %65 = vector.multi_reduction <maximumf>, %64, %cst_17 [2] : vector<2x8x8xf32> to vector<2x8xf32>
    %66 = vector.shape_cast %65 : vector<2x8xf32> to vector<2x8x1xf32>
    %67 = vector.broadcast %66 : vector<2x8x1xf32> to vector<2x8x8xf32>
    %68 = arith.subf %64, %67 : vector<2x8x8xf32>
    %69 = math.exp %68 : vector<2x8x8xf32>
    %cst_18 = arith.constant dense<0.000000e+00> : vector<2x8xf32>
    %70 = vector.multi_reduction <add>, %69, %cst_18 [2] : vector<2x8x8xf32> to vector<2x8xf32>
    %71 = vector.shape_cast %70 : vector<2x8xf32> to vector<2x8x1xf32>
    %72 = tpu.reciprocal %71 : vector<2x8x1xf32> -> vector<2x8x1xf32>
    %73 = vector.broadcast %72 : vector<2x8x1xf32> to vector<2x8x8xf32>
    %74 = arith.mulf %69, %73 : vector<2x8x8xf32>
    "tpu.trace_start"() <{level = 10 : i32, message = "bqk,bkd->bqd"}> : () -> ()
    %cst_19 = arith.constant dense<0.000000e+00> : vector<2x8x8xf32>
    %75 = tpu.matmul %74, %63, %cst_19 {dimension_numbers = #tpu.dot_dimension_numbers<[2], [1], [1], [2], [0, 0, 0, 1, 1, 2], [0], [0]>} : vector<2x8x8xf32>, vector<2x8x8xf32>, vector<2x8x8xf32> -> vector<2x8x8xf32>
    "tpu.trace_stop"() : () -> ()
    %76 = tpu.concatenate %21, %39, %57, %75 in 2 : vector<2x8x8xf32>, vector<2x8x8xf32>, vector<2x8x8xf32>, vector<2x8x8xf32> -> vector<2x8x32xf32>
    %77 = vector.shape_cast %76 : vector<2x8x32xf32> to vector<16x32xf32>
    %c0_20 = arith.constant 0 : index
    %c0_21 = arith.constant 0 : index
    %78 = vector.load %arg3[%c0_20, %c0_21] : memref<32x32xf32, #tpu.memory_space<vmem>>, vector<32x32xf32>
    %cst_22 = arith.constant dense<0.000000e+00> : vector<16x32xf32>
    %79 = tpu.matmul %77, %78, %cst_22 {dimension_numbers = #tpu.dot_dimension_numbers<[1], [0], [0], [1], [0, 0, 1, 1], [], []>} : vector<16x32xf32>, vector<32x32xf32>, vector<16x32xf32> -> vector<16x32xf32>
    %c0_23 = arith.constant 0 : index
    %c0_24 = arith.constant 0 : index
    %80 = vector.load %arg4[%c0_23, %c0_24] : memref<1x32xf32, #tpu.memory_space<vmem>>, vector<1x32xf32>
    %81 = vector.broadcast %80 : vector<1x32xf32> to vector<16x32xf32>
    %82 = arith.addf %79, %81 : vector<16x32xf32>
    %83 = vector.shape_cast %82 : vector<16x32xf32> to vector<2x8x32xf32>
    %84 = vector.extract_strided_slice %83 {offsets = [0, 0, 0], sizes = [2, 1, 32], strides = [1, 1, 1]} : vector<2x8x32xf32> to vector<2x1x32xf32>
    %85 = vector.shape_cast %84 : vector<2x1x32xf32> to vector<2x32xf32>
    %86 = vector.extract_strided_slice %83 {offsets = [0, 1, 0], sizes = [2, 1, 32], strides = [1, 1, 1]} : vector<2x8x32xf32> to vector<2x1x32xf32>
    %87 = vector.shape_cast %86 : vector<2x1x32xf32> to vector<2x32xf32>
    %88 = vector.extract_strided_slice %83 {offsets = [0, 2, 0], sizes = [2, 1, 32], strides = [1, 1, 1]} : vector<2x8x32xf32> to vector<2x1x32xf32>
    %89 = vector.shape_cast %88 : vector<2x1x32xf32> to vector<2x32xf32>
    %90 = vector.extract_strided_slice %83 {offsets = [0, 3, 0], sizes = [2, 1, 32], strides = [1, 1, 1]} : vector<2x8x32xf32> to vector<2x1x32xf32>
    %91 = vector.shape_cast %90 : vector<2x1x32xf32> to vector<2x32xf32>
    %92 = vector.extract_strided_slice %83 {offsets = [0, 4, 0], sizes = [2, 1, 32], strides = [1, 1, 1]} : vector<2x8x32xf32> to vector<2x1x32xf32>
    %93 = vector.shape_cast %92 : vector<2x1x32xf32> to vector<2x32xf32>
    %94 = vector.extract_strided_slice %83 {offsets = [0, 5, 0], sizes = [2, 1, 32], strides = [1, 1, 1]} : vector<2x8x32xf32> to vector<2x1x32xf32>
    %95 = vector.shape_cast %94 : vector<2x1x32xf32> to vector<2x32xf32>
    %96 = vector.extract_strided_slice %83 {offsets = [0, 6, 0], sizes = [2, 1, 32], strides = [1, 1, 1]} : vector<2x8x32xf32> to vector<2x1x32xf32>
    %97 = vector.shape_cast %96 : vector<2x1x32xf32> to vector<2x32xf32>
    %98 = vector.extract_strided_slice %83 {offsets = [0, 7, 0], sizes = [2, 1, 32], strides = [1, 1, 1]} : vector<2x8x32xf32> to vector<2x1x32xf32>
    %99 = vector.shape_cast %98 : vector<2x1x32xf32> to vector<2x32xf32>
    %100 = tpu.concatenate %85, %87, %89, %91, %93, %95, %97, %99 in 1 : vector<2x32xf32>, vector<2x32xf32>, vector<2x32xf32>, vector<2x32xf32>, vector<2x32xf32>, vector<2x32xf32>, vector<2x32xf32>, vector<2x32xf32> -> vector<2x256xf32>
    %c0_25 = arith.constant 0 : index
    %c0_26 = arith.constant 0 : index
    %101 = vector.load %arg5[%c0_25, %c0_26] : memref<2x256xf32, #tpu.memory_space<vmem>>, vector<2x256xf32>
    tpu.vector_store %arg5[%c0_25, %c0_26], %100 {strides = array<i32>} : memref<2x256xf32, #tpu.memory_space<vmem>>, vector<2x256xf32>,
    return
  }
  func.func @transform_0(%arg0: i32) -> (i32, i32, i32) {
    %c0_i32 = arith.constant 0 : i32
    %c0_i32_0 = arith.constant 0 : i32
    %c0_i32_1 = arith.constant 0 : i32
    return %arg0, %c0_i32, %c0_i32_0 : i32, i32, i32
  }
  func.func @transform_1(%arg0: i32) -> (i32, i32) {
    %c0_i32 = arith.constant 0 : i32
    %c0_i32_0 = arith.constant 0 : i32
    %c0_i32_1 = arith.constant 0 : i32
    return %c0_i32, %c0_i32_0 : i32, i32
  }
  func.func @transform_2(%arg0: i32) -> (i32, i32) {
    %c0_i32 = arith.constant 0 : i32
    %c0_i32_0 = arith.constant 0 : i32
    %c0_i32_1 = arith.constant 0 : i32
    return %c0_i32, %c0_i32_0 : i32, i32
  }
  func.func @transform_3(%arg0: i32) -> (i32, i32) {
    %c0_i32 = arith.constant 0 : i32
    %c0_i32_0 = arith.constant 0 : i32
    %c0_i32_1 = arith.constant 0 : i32
    return %c0_i32, %c0_i32_0 : i32, i32
  }
  func.func @transform_4(%arg0: i32) -> (i32, i32) {
    %c0_i32 = arith.constant 0 : i32
    %c0_i32_0 = arith.constant 0 : i32
    return %arg0, %c0_i32 : i32, i32
  }
}

</mosaic_0001>

<llo_original>
// kernel: tpu_custom_call.1
$region0: #{tpu_custom_call.1}
  #allocation0 [shape = 'u32[]', space=smem, size = 0x4, offset = 0x4, fixed_abs, tag = 'smem constant byte address 0x4 - core index']
  #allocation1 [shape = 'u32[144,128]{1,0:T(1,128)}', space=vmem, size = 0x12000, scoped, tag = 'internal scratch']
  %s0 = inlined_call_operand.hbm [shape: f32[2,8,96], index: 0, kind: input, shape index: {}]
  %s1 = inlined_call_operand.hbm [shape: f32[96,96], index: 1, kind: input, shape index: {}]
  %s2 = inlined_call_operand.hbm [shape: f32[32,32], index: 2, kind: input, shape index: {}]
  %s3 = inlined_call_operand.vmem [shape: f32[1,32], index: 3, kind: input, shape index: {}]
  %s4 = inlined_call_operand.hbm [shape: f32[2,256], index: 4, kind: output, shape index: {}]
  %s5 = sld [smem:[#allocation0]]
  $region38: #{tpu_custom_call.1} parent=0
    _
  %s7 = ssub.s32 1, %s5
  %s8 = scalar_select 0, %s7, %s5
  $region1: #{tpu_custom_call.1} parent=0
    #allocation2 [shape = 'u8[8192]{0}', space=vmem, size = 0x2000, scoped, tag = 'input window, operand 0, single buffered']
    #allocation3 [shape = 's32[1]{0}', space=sflag, size = 0x4, scoped, tag = 'scoped memory for tpu_custom_call.1']
    #allocation4 [shape = 's32[1]{0}', space=sflag, size = 0x4, scoped, tag = 'scoped memory for tpu_custom_call.1']
    #allocation5 [shape = 'u8[49152]{0}', space=vmem, size = 0xc000, scoped, tag = 'input window, operand 1, single buffered']
    #allocation6 [shape = 's32[1]{0}', space=sflag, size = 0x4, scoped, tag = 'scoped memory for tpu_custom_call.1']
    #allocation7 [shape = 'u8[16384]{0}', space=vmem, size = 0x4000, scoped, tag = 'input window, operand 2, single buffered']
    #allocation8 [shape = 'u8[2048]{0}', space=vmem, size = 0x800, scoped, tag = 'output window, operand 0, single buffered']
    %9 = vsyncpa [#allocation3], 0
    %10 = vsyncpa [#allocation6], 0
    %11 = vsyncpa [#allocation4], 0
    // Predicated region
    $region2: #{tpu_custom_call.1} parent=1 // pred_check
      _
    $region3: #{tpu_custom_call.1} parent=1 // pred_check_branch
      %13 = sbr.rel (0) target = $region5
    $region4: #{tpu_custom_call.1} parent=1 // pred_region
      %s15 = ssub.s32 256, 256
      %16 = vsyncadd [#allocation3], %s15
      %s17 = sshll.u32 [#allocation2], 4
      %s18 = int_to_ptr.vmem [resolvable:$true] %s17
      %23 = dma.hbm_to_vmem [thread:$0]  %s0, 256, %s18, [#allocation3], 128, 128, 8
    $region5: #{tpu_custom_call.1} parent=1 // pred_fallthru
      _
    // Predicated region
    $region6: #{tpu_custom_call.1} parent=1 // pred_check
      _
    $region7: #{tpu_custom_call.1} parent=1 // pred_check_branch
      %25 = sbr.rel (0) target = $region9
    $region8: #{tpu_custom_call.1} parent=1 // pred_region
      %s27 = ssub.s32 1536, 1536
      %28 = vsyncadd [#allocation6], %s27
      %s29 = sshll.u32 [#allocation5], 4
      %s30 = int_to_ptr.vmem [resolvable:$true] %s29
      %35 = dma.hbm_to_vmem [thread:$0]  %s1, 1536, %s30, [#allocation6], 128, 128, 8
    $region9: #{tpu_custom_call.1} parent=1 // pred_fallthru
      _
    // Predicated region
    $region10: #{tpu_custom_call.1} parent=1 // pred_check
      _
    $region11: #{tpu_custom_call.1} parent=1 // pred_check_branch
      %37 = sbr.rel (0) target = $region13
    $region12: #{tpu_custom_call.1} parent=1 // pred_region
      %s39 = ssub.s32 512, 512
      %40 = vsyncadd [#allocation6], %s39
      %s41 = sshll.u32 [#allocation7], 4
      %s42 = int_to_ptr.vmem [resolvable:$true] %s41
      %47 = dma.hbm_to_vmem [thread:$0]  %s2, 512, %s42, [#allocation6], 128, 128, 8
    $region13: #{tpu_custom_call.1} parent=1 // pred_fallthru
      _
    // Predicated region
    $region14: #{tpu_custom_call.1} parent=1 // pred_check
      _
    $region15: #{tpu_custom_call.1} parent=1 // pred_check_branch
      %49 = sbr.rel (0) target = $region17
    $region16: #{tpu_custom_call.1} parent=1 // pred_region
      _
    $region17: #{tpu_custom_call.1} parent=1 // pred_fallthru
      _
    // Predicated region
    $region18: #{tpu_custom_call.1} parent=1 // pred_check
      _
    $region19: #{tpu_custom_call.1} parent=1 // pred_check_branch
      %51 = sbr.rel (0) target = $region21
    $region20: #{tpu_custom_call.1} parent=1 // pred_region
      %52 = dma.done [#allocation3], 256
    $region21: #{tpu_custom_call.1} parent=1 // pred_fallthru
      _
    // Predicated region
    $region22: #{tpu_custom_call.1} parent=1 // pred_check
      _
    $region23: #{tpu_custom_call.1} parent=1 // pred_check_branch
      %54 = sbr.rel (0) target = $region25
    $region24: #{tpu_custom_call.1} parent=1 // pred_region
      %55 = dma.done [#allocation6], 1536
    $region25: #{tpu_custom_call.1} parent=1 // pred_fallthru
      _
    // Predicated region
    $region26: #{tpu_custom_call.1} parent=1 // pred_check
      _
    $region27: #{tpu_custom_call.1} parent=1 // pred_check_branch
      %57 = sbr.rel (0) target = $region29
    $region28: #{tpu_custom_call.1} parent=1 // pred_region
      %58 = dma.done [#allocation6], 512
    $region29: #{tpu_custom_call.1} parent=1 // pred_fallthru
      _
    %v59 = vld [vmem:[#allocation2] sm:$0xff]
    %v60 = vld [vmem:[#allocation2 + $0x8] sm:$0xff]
    %v61 = vld [vmem:[#allocation5] sm:$0xff]
    %v62 = vld [vmem:[#allocation5 + $0x8] sm:$0xff]
    %v63 = vld [vmem:[#allocation5 + $0x10] sm:$0xff]
    %v64 = vld [vmem:[#allocation5 + $0x18] sm:$0xff]
    %v65 = vld [vmem:[#allocation5 + $0x20] sm:$0xff]
    %v66 = vld [vmem:[#allocation5 + $0x28] sm:$0xff]
    %v67 = vld [vmem:[#allocation5 + $0x30] sm:$0xff]
    %v68 = vld [vmem:[#allocation5 + $0x38] sm:$0xff]
    %v69 = vld [vmem:[#allocation5 + $0x40] sm:$0xff]
    %v70 = vld [vmem:[#allocation5 + $0x48] sm:$0xff]
    %v71 = vld [vmem:[#allocation5 + $0x50] sm:$0xff]
    %v72 = vld [vmem:[#allocation5 + $0x58] sm:$0xff]
    %vm73 = vcmask 785408
    %v75 = vsel %vm73, %v59, 0
    %v78 = vsel %vm73, %v60, 0
    %80 = vmatprep.subr.mxu0 0.0
    %81 = vmatpush1.msra.mxu0 %v61
    %82 = vmatprep.subr.mxu0 0.0
    %83 = vmatpush1.msra.mxu0 %v62
    %84 = vmatprep.subr.mxu0 0.0
    %85 = vmatpush1.msra.mxu0 %v63
    %86 = vmatprep.subr.mxu0 0.0
    %87 = vmatpush1.msra.mxu0 %v64
    %88 = vmatprep.subr.mxu0 0.0
    %89 = vmatpush1.msra.mxu0 %v65
    %90 = vmatprep.subr.mxu0 0.0
    %91 = vmatpush1.msra.mxu0 %v66
    %92 = vmatprep.subr.mxu0 0.0
    %93 = vmatpush1.msra.mxu0 %v67
    %94 = vmatprep.subr.mxu0 0.0
    %95 = vmatpush1.msra.mxu0 %v68
    %96 = vmatprep.subr.mxu0 0.0
    %97 = vmatpush1.msra.mxu0 %v69
    %98 = vmatprep.subr.mxu0 0.0
    %99 = vmatpush1.msra.mxu0 %v70
    %100 = vmatprep.subr.mxu0 0.0
    %101 = vmatpush1.msra.mxu0 %v71
    %102 = vmatprep.subr.mxu0 0.0
    %103 = vmatpush1.msra.mxu0 %v72
    %104 = vmatprep.subr.mxu0 0.0
    %105 = vmatpush1.msra.mxu0 0.0
    %106 = vmatprep.subr.mxu0 0.0
    %107 = vmatpush1.msra.mxu0 0.0
    %108 = vmatprep.subr.mxu0 0.0
    %109 = vmatpush1.msra.mxu0 0.0
    %110 = vmatprep.subr.mxu0 0.0
    %111 = vmatpush1.msra.mxu0 0.0
    %112 = vmatprep.subr.mxu0 0.0
    %113 = vmatpush1.msra.mxu0 0.0
    %114 = vmatprep.subr.mxu0 0.0
    %115 = vmatpush1.msra.mxu0 0.0
    %116 = vmatprep.subr.mxu0 0.0
    %117 = vmatpush1.msra.mxu0 0.0
    %118 = vmatprep.subr.mxu0 0.0
    %119 = vmatpush1.msra.mxu0 0.0
    %120 = vmatprep.subr.mxu0 0.0
    %121 = vmatpush1.msra.mxu0 0.0
    %122 = vmatprep.subr.mxu0 0.0
    %123 = vmatpush1.msra.mxu0 0.0
    %124 = vmatprep.subr.mxu0 0.0
    %125 = vmatpush1.msra.mxu0 0.0
    %126 = vmatprep.subr.mxu0 0.0
    %127 = vmatpush1.msra.mxu0 0.0
    %128 = vmatprep.subr.mxu0 0.0
    %129 = vmatpush1.msra.mxu0 0.0
    %130 = vmatprep.subr.mxu0 0.0
    %131 = vmatpush1.msra.mxu0 0.0
    %132 = vmatprep.subr.mxu0 0.0
    %133 = vmatpush1.msra.mxu0 0.0
    %134 = vmatprep.subr.mxu0 0.0
    %135 = vmatpush1.msra.mxu0 0.0
    %136 = vmatprep.subr.mxu0 0.0
    %137 = vmatpush1.msra.mxu0 0.0
    %138 = vmatprep.subr.mxu0 0.0
    %139 = vmatpush1.msra.mxu0 0.0
    %140 = vmatprep.subr.mxu0 0.0
    %141 = vmatpush1.msra.mxu0 0.0
    %142 = vmatprep.subr.mxu0 0.0
    %143 = vmatpush1.msra.mxu0 0.0
    %144 = vmatprep.mubr.f32.mxu0 0.0
    %145 = vmatmul.mubr.f32.gmra.mrb[0].mxu0 %v75
    %v146 = vpop.f32.mrb[0].mxu0
    %v147 = vadd.f32 0.0, %v146
    %v148 = vpop.f32.mrb[0].mxu0
    %149 = vmatprep.mubr.f32.mxu0 0.0
    %150 = vmatmul.mubr.f32.gmra.mrb[0].mxu0 %v78
    %v151 = vpop.f32.mrb[0].mxu0
    %v152 = vadd.f32 0.0, %v151
    %v153 = vpop.f32.mrb[0].mxu0
    %154 = vdwg.mxu0
    %156 = vrot.lane.b32.xlu0 %v147, 96
    %v157 = vpop.permute.xlu0 %156
    %vm158 = vcmask 64512
    %v159 = vsel %vm158, %v147, 0
    %v161 = vsel %vm158, %v157, 0
    %163 = vmatprep.subr.mxu0 0.0
    %164 = vmatpush1.xpose.msra.mxu0 %v161
    %165 = vmatprep.subr.mxu0 0.0
    %166 = vmatpush1.xpose.msra.mxu0 0.0
    %167 = vmatprep.subr.mxu0 0.0
    %168 = vmatpush1.xpose.msra.mxu0 0.0
    %169 = vmatprep.subr.mxu0 0.0
    %170 = vmatpush1.xpose.msra.mxu0 0.0
    %171 = vmatprep.subr.mxu0 0.0
    %172 = vmatpush1.xpose.msra.mxu0 0.0
    %173 = vmatprep.subr.mxu0 0.0
    %174 = vmatpush1.xpose.msra.mxu0 0.0
    %175 = vmatprep.subr.mxu0 0.0
    %176 = vmatpush1.xpose.msra.mxu0 0.0
    %177 = vmatprep.subr.mxu0 0.0
    %178 = vmatpush1.xpose.msra.mxu0 0.0
    %179 = vmatprep.subr.mxu0 0.0
    %180 = vmatpush1.xpose.msra.mxu0 0.0
    %181 = vmatprep.subr.mxu0 0.0
    %182 = vmatpush1.xpose.msra.mxu0 0.0
    %183 = vmatprep.subr.mxu0 0.0
    %184 = vmatpush1.xpose.msra.mxu0 0.0
    %185 = vmatprep.subr.mxu0 0.0
    %186 = vmatpush1.xpose.msra.mxu0 0.0
    %187 = vmatprep.subr.mxu0 0.0
    %188 = vmatpush1.xpose.msra.mxu0 0.0
    %189 = vmatprep.subr.mxu0 0.0
    %190 = vmatpush1.xpose.msra.mxu0 0.0
    %191 = vmatprep.subr.mxu0 0.0
    %192 = vmatpush1.xpose.msra.mxu0 0.0
    %193 = vmatprep.subr.mxu0 0.0
    %194 = vmatpush1.xpose.msra.mxu0 0.0
    %195 = vmatprep.subr.mxu0 0.0
    %196 = vmatpush1.xpose.msra.mxu0 0.0
    %197 = vmatprep.subr.mxu0 0.0
    %198 = vmatpush1.xpose.msra.mxu0 0.0
    %199 = vmatprep.subr.mxu0 0.0
    %200 = vmatpush1.xpose.msra.mxu0 0.0
    %201 = vmatprep.subr.mxu0 0.0
    %202 = vmatpush1.xpose.msra.mxu0 0.0
    %203 = vmatprep.subr.mxu0 0.0
    %204 = vmatpush1.xpose.msra.mxu0 0.0
    %205 = vmatprep.subr.mxu0 0.0
    %206 = vmatpush1.xpose.msra.mxu0 0.0
    %207 = vmatprep.subr.mxu0 0.0
    %208 = vmatpush1.xpose.msra.mxu0 0.0
    %209 = vmatprep.subr.mxu0 0.0
    %210 = vmatpush1.xpose.msra.mxu0 0.0
    %211 = vmatprep.subr.mxu0 0.0
    %212 = vmatpush1.xpose.msra.mxu0 0.0
    %213 = vmatprep.subr.mxu0 0.0
    %214 = vmatpush1.xpose.msra.mxu0 0.0
    %215 = vmatprep.subr.mxu0 0.0
    %216 = vmatpush1.xpose.msra.mxu0 0.0
    %217 = vmatprep.subr.mxu0 0.0
    %218 = vmatpush1.xpose.msra.mxu0 0.0
    %219 = vmatprep.subr.mxu0 0.0
    %220 = vmatpush1.xpose.msra.mxu0 0.0
    %221 = vmatprep.subr.mxu0 0.0
    %222 = vmatpush1.xpose.msra.mxu0 0.0
    %223 = vmatprep.subr.mxu0 0.0
    %224 = vmatpush1.xpose.msra.mxu0 0.0
    %225 = vmatprep.subr.mxu0 0.0
    %226 = vmatpush1.xpose.msra.mxu0 0.0
    %227 = vmatprep.mubr.f32.mxu0 0.0
    %228 = vmatmul.mubr.f32.gmra.mrb[0].mxu0 %v159
    %v229 = vpop.f32.mrb[0].mxu0
    %v230 = vadd.f32 0.0, %v229
    %v231 = vpop.f32.mrb[0].mxu0
    %232 = vdwg.mxu0
    %234 = vrot.lane.b32.xlu0 %v152, 96
    %v235 = vpop.permute.xlu0 %234
    %v236 = vsel %vm158, %v152, 0
    %v238 = vsel %vm158, %v235, 0
    %240 = vmatprep.subr.mxu0 0.0
    %241 = vmatpush1.xpose.msra.mxu0 %v238
    %242 = vmatprep.subr.mxu0 0.0
    %243 = vmatpush1.xpose.msra.mxu0 0.0
    %244 = vmatprep.subr.mxu0 0.0
    %245 = vmatpush1.xpose.msra.mxu0 0.0
    %246 = vmatprep.subr.mxu0 0.0
    %247 = vmatpush1.xpose.msra.mxu0 0.0
    %248 = vmatprep.subr.mxu0 0.0
    %249 = vmatpush1.xpose.msra.mxu0 0.0
    %250 = vmatprep.subr.mxu0 0.0
    %251 = vmatpush1.xpose.msra.mxu0 0.0
    %252 = vmatprep.subr.mxu0 0.0
    %253 = vmatpush1.xpose.msra.mxu0 0.0
    %254 = vmatprep.subr.mxu0 0.0
    %255 = vmatpush1.xpose.msra.mxu0 0.0
    %256 = vmatprep.subr.mxu0 0.0
    %257 = vmatpush1.xpose.msra.mxu0 0.0
    %258 = vmatprep.subr.mxu0 0.0
    %259 = vmatpush1.xpose.msra.mxu0 0.0
    %260 = vmatprep.subr.mxu0 0.0
    %261 = vmatpush1.xpose.msra.mxu0 0.0
    %262 = vmatprep.subr.mxu0 0.0
    %263 = vmatpush1.xpose.msra.mxu0 0.0
    %264 = vmatprep.subr.mxu0 0.0
    %265 = vmatpush1.xpose.msra.mxu0 0.0
    %266 = vmatprep.subr.mxu0 0.0
    %267 = vmatpush1.xpose.msra.mxu0 0.0
    %268 = vmatprep.subr.mxu0 0.0
    %269 = vmatpush1.xpose.msra.mxu0 0.0
    %270 = vmatprep.subr.mxu0 0.0
    %271 = vmatpush1.xpose.msra.mxu0 0.0
    %272 = vmatprep.subr.mxu0 0.0
    %273 = vmatpush1.xpose.msra.mxu0 0.0
    %274 = vmatprep.subr.mxu0 0.0
    %275 = vmatpush1.xpose.msra.mxu0 0.0
    %276 = vmatprep.subr.mxu0 0.0
    %277 = vmatpush1.xpose.msra.mxu0 0.0
    %278 = vmatprep.subr.mxu0 0.0
    %279 = vmatpush1.xpose.msra.mxu0 0.0
    %280 = vmatprep.subr.mxu0 0.0
    %281 = vmatpush1.xpose.msra.mxu0 0.0
    %282 = vmatprep.subr.mxu0 0.0
    %283 = vmatpush1.xpose.msra.mxu0 0.0
    %284 = vmatprep.subr.mxu0 0.0
    %285 = vmatpush1.xpose.msra.mxu0 0.0
    %286 = vmatprep.subr.mxu0 0.0
    %287 = vmatpush1.xpose.msra.mxu0 0.0
    %288 = vmatprep.subr.mxu0 0.0
    %289 = vmatpush1.xpose.msra.mxu0 0.0
    %290 = vmatprep.subr.mxu0 0.0
    %291 = vmatpush1.xpose.msra.mxu0 0.0
    %292 = vmatprep.subr.mxu0 0.0
    %293 = vmatpush1.xpose.msra.mxu0 0.0
    %294 = vmatprep.subr.mxu0 0.0
    %295 = vmatpush1.xpose.msra.mxu0 0.0
    %296 = vmatprep.subr.mxu0 0.0
    %297 = vmatpush1.xpose.msra.mxu0 0.0
    %298 = vmatprep.subr.mxu0 0.0
    %299 = vmatpush1.xpose.msra.mxu0 0.0
    %300 = vmatprep.subr.mxu0 0.0
    %301 = vmatpush1.xpose.msra.mxu0 0.0
    %302 = vmatprep.subr.mxu0 0.0
    %303 = vmatpush1.xpose.msra.mxu0 0.0
    %304 = vmatprep.mubr.f32.mxu0 0.0
    %305 = vmatmul.mubr.f32.gmra.mrb[0].mxu0 %v236
    %v306 = vpop.f32.mrb[0].mxu0
    %v307 = vadd.f32 0.0, %v306
    %v308 = vpop.f32.mrb[0].mxu0
    %309 = vdwg.mxu0
    %v310 = vsel %vm158, %v230, -inf
    %311 = vmax.xlane.f32.xlu0 %v310
    %v312 = vpop.xlane.xlu0 %311
    %v313 = vsel %vm158, %v307, -inf
    %314 = vmax.xlane.f32.xlu0 %v313
    %v315 = vpop.xlane.xlu0 %314
    %v316 = vsub.f32 %v230, %v312
    %v317 = vsub.f32 %v307, %v315
    %v318 = vmul.f32 %v316, 1.442695
    %v319 = vpow.pop %v318
    %v320 = vmul.f32 %v317, 1.442695
    %v321 = vpow.pop %v320
    %v322 = vsel %vm158, %v319, 0.0
    %323 = vadd.xlane.f32.xlu0 %v322
    %v324 = vpop.xlane.xlu0 %323
    %v325 = vsel %vm158, %v321, 0.0
    %326 = vadd.xlane.f32.xlu0 %v325
    %v327 = vpop.xlane.xlu0 %326
    %v328 = vrcp.pop %v324
    %v329 = vrcp.pop %v327
    %v330 = vmul.f32 %v319, %v328
    %v331 = vmul.f32 %v321, %v329
    %332 = vrot.lane.b32.xlu0 %v147, 64
    %v333 = vpop.permute.xlu0 %332
    %v336 = vsel %vm158, %v330, 0
    %338 = vmatprep.subr.mxu0 0.0
    %339 = vmatpush1.msra.mxu0 %v333
    %340 = vmatprep.subr.mxu0 0.0
    %341 = vmatpush1.msra.mxu0 0.0
    %342 = vmatprep.subr.mxu0 0.0
    %343 = vmatpush1.msra.mxu0 0.0
    %344 = vmatprep.subr.mxu0 0.0
    %345 = vmatpush1.msra.mxu0 0.0
    %346 = vmatprep.subr.mxu0 0.0
    %347 = vmatpush1.msra.mxu0 0.0
    %348 = vmatprep.subr.mxu0 0.0
    %349 = vmatpush1.msra.mxu0 0.0
    %350 = vmatprep.subr.mxu0 0.0
    %351 = vmatpush1.msra.mxu0 0.0
    %352 = vmatprep.subr.mxu0 0.0
    %353 = vmatpush1.msra.mxu0 0.0
    %354 = vmatprep.subr.mxu0 0.0
    %355 = vmatpush1.msra.mxu0 0.0
    %356 = vmatprep.subr.mxu0 0.0
    %357 = vmatpush1.msra.mxu0 0.0
    %358 = vmatprep.subr.mxu0 0.0
    %359 = vmatpush1.msra.mxu0 0.0
    %360 = vmatprep.subr.mxu0 0.0
    %361 = vmatpush1.msra.mxu0 0.0
    %362 = vmatprep.subr.mxu0 0.0
    %363 = vmatpush1.msra.mxu0 0.0
    %364 = vmatprep.subr.mxu0 0.0
    %365 = vmatpush1.msra.mxu0 0.0
    %366 = vmatprep.subr.mxu0 0.0
    %367 = vmatpush1.msra.mxu0 0.0
    %368 = vmatprep.subr.mxu0 0.0
    %369 = vmatpush1.msra.mxu0 0.0
    %370 = vmatprep.subr.mxu0 0.0
    %371 = vmatpush1.msra.mxu0 0.0
    %372 = vmatprep.subr.mxu0 0.0
    %373 = vmatpush1.msra.mxu0 0.0
    %374 = vmatprep.subr.mxu0 0.0
    %375 = vmatpush1.msra.mxu0 0.0
    %376 = vmatprep.subr.mxu0 0.0
    %377 = vmatpush1.msra.mxu0 0.0
    %378 = vmatprep.subr.mxu0 0.0
    %379 = vmatpush1.msra.mxu0 0.0
    %380 = vmatprep.subr.mxu0 0.0
    %381 = vmatpush1.msra.mxu0 0.0
    %382 = vmatprep.subr.mxu0 0.0
    %383 = vmatpush1.msra.mxu0 0.0
    %384 = vmatprep.subr.mxu0 0.0
    %385 = vmatpush1.msra.mxu0 0.0
    %386 = vmatprep.subr.mxu0 0.0
    %387 = vmatpush1.msra.mxu0 0.0
    %388 = vmatprep.subr.mxu0 0.0
    %389 = vmatpush1.msra.mxu0 0.0
    %390 = vmatprep.subr.mxu0 0.0
    %391 = vmatpush1.msra.mxu0 0.0
    %392 = vmatprep.subr.mxu0 0.0
    %393 = vmatpush1.msra.mxu0 0.0
    %394 = vmatprep.subr.mxu0 0.0
    %395 = vmatpush1.msra.mxu0 0.0
    %396 = vmatprep.subr.mxu0 0.0
    %397 = vmatpush1.msra.mxu0 0.0
    %398 = vmatprep.subr.mxu0 0.0
    %399 = vmatpush1.msra.mxu0 0.0
    %400 = vmatprep.subr.mxu0 0.0
    %401 = vmatpush1.msra.mxu0 0.0
    %402 = vmatprep.mubr.f32.mxu0 0.0
    %403 = vmatmul.mubr.f32.gmra.mrb[0].mxu0 %v336
    %v404 = vpop.f32.mrb[0].mxu0
    %v405 = vadd.f32 0.0, %v404
    %v406 = vpop.f32.mrb[0].mxu0
    %407 = vdwg.mxu0
    %408 = vrot.lane.b32.xlu0 %v152, 64
    %v409 = vpop.permute.xlu0 %408
    %v412 = vsel %vm158, %v331, 0
    %414 = vmatprep.subr.mxu0 0.0
    %415 = vmatpush1.msra.mxu0 %v409
    %416 = vmatprep.subr.mxu0 0.0
    %417 = vmatpush1.msra.mxu0 0.0
    %418 = vmatprep.subr.mxu0 0.0
    %419 = vmatpush1.msra.mxu0 0.0
    %420 = vmatprep.subr.mxu0 0.0
    %421 = vmatpush1.msra.mxu0 0.0
    %422 = vmatprep.subr.mxu0 0.0
    %423 = vmatpush1.msra.mxu0 0.0
    %424 = vmatprep.subr.mxu0 0.0
    %425 = vmatpush1.msra.mxu0 0.0
    %426 = vmatprep.subr.mxu0 0.0
    %427 = vmatpush1.msra.mxu0 0.0
    %428 = vmatprep.subr.mxu0 0.0
    %429 = vmatpush1.msra.mxu0 0.0
    %430 = vmatprep.subr.mxu0 0.0
    %431 = vmatpush1.msra.mxu0 0.0
    %432 = vmatprep.subr.mxu0 0.0
    %433 = vmatpush1.msra.mxu0 0.0
    %434 = vmatprep.subr.mxu0 0.0
    %435 = vmatpush1.msra.mxu0 0.0
    %436 = vmatprep.subr.mxu0 0.0
    %437 = vmatpush1.msra.mxu0 0.0
    %438 = vmatprep.subr.mxu0 0.0
    %439 = vmatpush1.msra.mxu0 0.0
    %440 = vmatprep.subr.mxu0 0.0
    %441 = vmatpush1.msra.mxu0 0.0
    %442 = vmatprep.subr.mxu0 0.0
    %443 = vmatpush1.msra.mxu0 0.0
    %444 = vmatprep.subr.mxu0 0.0
    %445 = vmatpush1.msra.mxu0 0.0
    %446 = vmatprep.subr.mxu0 0.0
    %447 = vmatpush1.msra.mxu0 0.0
    %448 = vmatprep.subr.mxu0 0.0
    %449 = vmatpush1.msra.mxu0 0.0
    %450 = vmatprep.subr.mxu0 0.0
    %451 = vmatpush1.msra.mxu0 0.0
    %452 = vmatprep.subr.mxu0 0.0
    %453 = vmatpush1.msra.mxu0 0.0
    %454 = vmatprep.subr.mxu0 0.0
    %455 = vmatpush1.msra.mxu0 0.0
    %456 = vmatprep.subr.mxu0 0.0
    %457 = vmatpush1.msra.mxu0 0.0
    %458 = vmatprep.subr.mxu0 0.0
    %459 = vmatpush1.msra.mxu0 0.0
    %460 = vmatprep.subr.mxu0 0.0
    %461 = vmatpush1.msra.mxu0 0.0
    %462 = vmatprep.subr.mxu0 0.0
    %463 = vmatpush1.msra.mxu0 0.0
    %464 = vmatprep.subr.mxu0 0.0
    %465 = vmatpush1.msra.mxu0 0.0
    %466 = vmatprep.subr.mxu0 0.0
    %467 = vmatpush1.msra.mxu0 0.0
    %468 = vmatprep.subr.mxu0 0.0
    %469 = vmatpush1.msra.mxu0 0.0
    %470 = vmatprep.subr.mxu0 0.0
    %471 = vmatpush1.msra.mxu0 0.0
    %472 = vmatprep.subr.mxu0 0.0
    %473 = vmatpush1.msra.mxu0 0.0
    %474 = vmatprep.subr.mxu0 0.0
    %475 = vmatpush1.msra.mxu0 0.0
    %476 = vmatprep.subr.mxu0 0.0
    %477 = vmatpush1.msra.mxu0 0.0
    %478 = vmatprep.mubr.f32.mxu0 0.0
    %479 = vmatmul.mubr.f32.gmra.mrb[0].mxu0 %v412
    %v480 = vpop.f32.mrb[0].mxu0
    %v481 = vadd.f32 0.0, %v480
    %v482 = vpop.f32.mrb[0].mxu0
    %483 = vdwg.mxu0
    %484 = vrot.lane.b32.xlu0 %v147, 120
    %v485 = vpop.permute.xlu0 %484
    %486 = vrot.lane.b32.xlu0 %v147, 88
    %v487 = vpop.permute.xlu0 %486
    %v488 = vsel %vm158, %v485, 0
    %v490 = vsel %vm158, %v487, 0
    %492 = vmatprep.subr.mxu0 0.0
    %493 = vmatpush1.xpose.msra.mxu0 %v490
    %494 = vmatprep.subr.mxu0 0.0
    %495 = vmatpush1.xpose.msra.mxu0 0.0
    %496 = vmatprep.subr.mxu0 0.0
    %497 = vmatpush1.xpose.msra.mxu0 0.0
    %498 = vmatprep.subr.mxu0 0.0
    %499 = vmatpush1.xpose.msra.mxu0 0.0
    %500 = vmatprep.subr.mxu0 0.0
    %501 = vmatpush1.xpose.msra.mxu0 0.0
    %502 = vmatprep.subr.mxu0 0.0
    %503 = vmatpush1.xpose.msra.mxu0 0.0
    %504 = vmatprep.subr.mxu0 0.0
    %505 = vmatpush1.xpose.msra.mxu0 0.0
    %506 = vmatprep.subr.mxu0 0.0
    %507 = vmatpush1.xpose.msra.mxu0 0.0
    %508 = vmatprep.subr.mxu0 0.0
    %509 = vmatpush1.xpose.msra.mxu0 0.0
    %510 = vmatprep.subr.mxu0 0.0
    %511 = vmatpush1.xpose.msra.mxu0 0.0
    %512 = vmatprep.subr.mxu0 0.0
    %513 = vmatpush1.xpose.msra.mxu0 0.0
    %514 = vmatprep.subr.mxu0 0.0
    %515 = vmatpush1.xpose.msra.mxu0 0.0
    %516 = vmatprep.subr.mxu0 0.0
    %517 = vmatpush1.xpose.msra.mxu0 0.0
    %518 = vmatprep.subr.mxu0 0.0
    %519 = vmatpush1.xpose.msra.mxu0 0.0
    %520 = vmatprep.subr.mxu0 0.0
    %521 = vmatpush1.xpose.msra.mxu0 0.0
    %522 = vmatprep.subr.mxu0 0.0
    %523 = vmatpush1.xpose.msra.mxu0 0.0
    %524 = vmatprep.subr.mxu0 0.0
    %525 = vmatpush1.xpose.msra.mxu0 0.0
    %526 = vmatprep.subr.mxu0 0.0
    %527 = vmatpush1.xpose.msra.mxu0 0.0
    %528 = vmatprep.subr.mxu0 0.0
    %529 = vmatpush1.xpose.msra.mxu0 0.0
    %530 = vmatprep.subr.mxu0 0.0
    %531 = vmatpush1.xpose.msra.mxu0 0.0
    %532 = vmatprep.subr.mxu0 0.0
    %533 = vmatpush1.xpose.msra.mxu0 0.0
    %534 = vmatprep.subr.mxu0 0.0
    %535 = vmatpush1.xpose.msra.mxu0 0.0
    %536 = vmatprep.subr.mxu0 0.0
    %537 = vmatpush1.xpose.msra.mxu0 0.0
    %538 = vmatprep.subr.mxu0 0.0
    %539 = vmatpush1.xpose.msra.mxu0 0.0
    %540 = vmatprep.subr.mxu0 0.0
    %541 = vmatpush1.xpose.msra.mxu0 0.0
    %542 = vmatprep.subr.mxu0 0.0
    %543 = vmatpush1.xpose.msra.mxu0 0.0
    %544 = vmatprep.subr.mxu0 0.0
    %545 = vmatpush1.xpose.msra.mxu0 0.0
    %546 = vmatprep.subr.mxu0 0.0
    %547 = vmatpush1.xpose.msra.mxu0 0.0
    %548 = vmatprep.subr.mxu0 0.0
    %549 = vmatpush1.xpose.msra.mxu0 0.0
    %550 = vmatprep.subr.mxu0 0.0
    %551 = vmatpush1.xpose.msra.mxu0 0.0
    %552 = vmatprep.subr.mxu0 0.0
    %553 = vmatpush1.xpose.msra.mxu0 0.0
    %554 = vmatprep.subr.mxu0 0.0
    %555 = vmatpush1.xpose.msra.mxu0 0.0
    %556 = vmatprep.mubr.f32.mxu0 0.0
    %557 = vmatmul.mubr.f32.gmra.mrb[0].mxu0 %v488
    %v558 = vpop.f32.mrb[0].mxu0
    %v559 = vadd.f32 0.0, %v558
    %v560 = vpop.f32.mrb[0].mxu0
    %561 = vdwg.mxu0
    %562 = vrot.lane.b32.xlu0 %v152, 120
    %v563 = vpop.permute.xlu0 %562
    %564 = vrot.lane.b32.xlu0 %v152, 88
    %v565 = vpop.permute.xlu0 %564
    %v566 = vsel %vm158, %v563, 0
    %v568 = vsel %vm158, %v565, 0
    %570 = vmatprep.subr.mxu0 0.0
    %571 = vmatpush1.xpose.msra.mxu0 %v568
    %572 = vmatprep.subr.mxu0 0.0
    %573 = vmatpush1.xpose.msra.mxu0 0.0
    %574 = vmatprep.subr.mxu0 0.0
    %575 = vmatpush1.xpose.msra.mxu0 0.0
    %576 = vmatprep.subr.mxu0 0.0
    %577 = vmatpush1.xpose.msra.mxu0 0.0
    %578 = vmatprep.subr.mxu0 0.0
    %579 = vmatpush1.xpose.msra.mxu0 0.0
    %580 = vmatprep.subr.mxu0 0.0
    %581 = vmatpush1.xpose.msra.mxu0 0.0
    %582 = vmatprep.subr.mxu0 0.0
    %583 = vmatpush1.xpose.msra.mxu0 0.0
    %584 = vmatprep.subr.mxu0 0.0
    %585 = vmatpush1.xpose.msra.mxu0 0.0
    %586 = vmatprep.subr.mxu0 0.0
    %587 = vmatpush1.xpose.msra.mxu0 0.0
    %588 = vmatprep.subr.mxu0 0.0
    %589 = vmatpush1.xpose.msra.mxu0 0.0
    %590 = vmatprep.subr.mxu0 0.0
    %591 = vmatpush1.xpose.msra.mxu0 0.0
    %592 = vmatprep.subr.mxu0 0.0
    %593 = vmatpush1.xpose.msra.mxu0 0.0
    %594 = vmatprep.subr.mxu0 0.0
    %595 = vmatpush1.xpose.msra.mxu0 0.0
    %596 = vmatprep.subr.mxu0 0.0
    %597 = vmatpush1.xpose.msra.mxu0 0.0
    %598 = vmatprep.subr.mxu0 0.0
    %599 = vmatpush1.xpose.msra.mxu0 0.0
    %600 = vmatprep.subr.mxu0 0.0
    %601 = vmatpush1.xpose.msra.mxu0 0.0
    %602 = vmatprep.subr.mxu0 0.0
    %603 = vmatpush1.xpose.msra.mxu0 0.0
    %604 = vmatprep.subr.mxu0 0.0
    %605 = vmatpush1.xpose.msra.mxu0 0.0
    %606 = vmatprep.subr.mxu0 0.0
    %607 = vmatpush1.xpose.msra.mxu0 0.0
    %608 = vmatprep.subr.mxu0 0.0
    %609 = vmatpush1.xpose.msra.mxu0 0.0
    %610 = vmatprep.subr.mxu0 0.0
    %611 = vmatpush1.xpose.msra.mxu0 0.0
    %612 = vmatprep.subr.mxu0 0.0
    %613 = vmatpush1.xpose.msra.mxu0 0.0
    %614 = vmatprep.subr.mxu0 0.0
    %615 = vmatpush1.xpose.msra.mxu0 0.0
    %616 = vmatprep.subr.mxu0 0.0
    %617 = vmatpush1.xpose.msra.mxu0 0.0
    %618 = vmatprep.subr.mxu0 0.0
    %619 = vmatpush1.xpose.msra.mxu0 0.0
    %620 = vmatprep.subr.mxu0 0.0
    %621 = vmatpush1.xpose.msra.mxu0 0.0
    %622 = vmatprep.subr.mxu0 0.0
    %623 = vmatpush1.xpose.msra.mxu0 0.0
    %624 = vmatprep.subr.mxu0 0.0
    %625 = vmatpush1.xpose.msra.mxu0 0.0
    %626 = vmatprep.subr.mxu0 0.0
    %627 = vmatpush1.xpose.msra.mxu0 0.0
    %628 = vmatprep.subr.mxu0 0.0
    %629 = vmatpush1.xpose.msra.mxu0 0.0
    %630 = vmatprep.subr.mxu0 0.0
    %631 = vmatpush1.xpose.msra.mxu0 0.0
    %632 = vmatprep.subr.mxu0 0.0
    %633 = vmatpush1.xpose.msra.mxu0 0.0
    %634 = vmatprep.mubr.f32.mxu0 0.0
    %635 = vmatmul.mubr.f32.gmra.mrb[0].mxu0 %v566
    %v636 = vpop.f32.mrb[0].mxu0
    %v637 = vadd.f32 0.0, %v636
    %v638 = vpop.f32.mrb[0].mxu0
    %639 = vdwg.mxu0
    %v640 = vsel %vm158, %v559, -inf
    %641 = vmax.xlane.f32.xlu0 %v640
    %v642 = vpop.xlane.xlu0 %641
    %v643 = vsel %vm158, %v637, -inf
    %644 = vmax.xlane.f32.xlu0 %v643
    %v645 = vpop.xlane.xlu0 %644
    %v646 = vsub.f32 %v559, %v642
    %v647 = vsub.f32 %v637, %v645
    %v648 = vmul.f32 %v646, 1.442695
    %v649 = vpow.pop %v648
    %v650 = vmul.f32 %v647, 1.442695
    %v651 = vpow.pop %v650
    %v652 = vsel %vm158, %v649, 0.0
    %653 = vadd.xlane.f32.xlu0 %v652
    %v654 = vpop.xlane.xlu0 %653
    %v655 = vsel %vm158, %v651, 0.0
    %656 = vadd.xlane.f32.xlu0 %v655
    %v657 = vpop.xlane.xlu0 %656
    %v658 = vrcp.pop %v654
    %v659 = vrcp.pop %v657
    %v660 = vmul.f32 %v649, %v658
    %v661 = vmul.f32 %v651, %v659
    %662 = vrot.lane.b32.xlu0 %v147, 56
    %v663 = vpop.permute.xlu0 %662
    %v666 = vsel %vm158, %v660, 0
    %668 = vmatprep.subr.mxu0 0.0
    %669 = vmatpush1.msra.mxu0 %v663
    %670 = vmatprep.subr.mxu0 0.0
    %671 = vmatpush1.msra.mxu0 0.0
    %672 = vmatprep.subr.mxu0 0.0
    %673 = vmatpush1.msra.mxu0 0.0
    %674 = vmatprep.subr.mxu0 0.0
    %675 = vmatpush1.msra.mxu0 0.0
    %676 = vmatprep.subr.mxu0 0.0
    %677 = vmatpush1.msra.mxu0 0.0
    %678 = vmatprep.subr.mxu0 0.0
    %679 = vmatpush1.msra.mxu0 0.0
    %680 = vmatprep.subr.mxu0 0.0
    %681 = vmatpush1.msra.mxu0 0.0
    %682 = vmatprep.subr.mxu0 0.0
    %683 = vmatpush1.msra.mxu0 0.0
    %684 = vmatprep.subr.mxu0 0.0
    %685 = vmatpush1.msra.mxu0 0.0
    %686 = vmatprep.subr.mxu0 0.0
    %687 = vmatpush1.msra.mxu0 0.0
    %688 = vmatprep.subr.mxu0 0.0
    %689 = vmatpush1.msra.mxu0 0.0
    %690 = vmatprep.subr.mxu0 0.0
    %691 = vmatpush1.msra.mxu0 0.0
    %692 = vmatprep.subr.mxu0 0.0
    %693 = vmatpush1.msra.mxu0 0.0
    %694 = vmatprep.subr.mxu0 0.0
    %695 = vmatpush1.msra.mxu0 0.0
    %696 = vmatprep.subr.mxu0 0.0
    %697 = vmatpush1.msra.mxu0 0.0
    %698 = vmatprep.subr.mxu0 0.0
    %699 = vmatpush1.msra.mxu0 0.0
    %700 = vmatprep.subr.mxu0 0.0
    %701 = vmatpush1.msra.mxu0 0.0
    %702 = vmatprep.subr.mxu0 0.0
    %703 = vmatpush1.msra.mxu0 0.0
    %704 = vmatprep.subr.mxu0 0.0
    %705 = vmatpush1.msra.mxu0 0.0
    %706 = vmatprep.subr.mxu0 0.0
    %707 = vmatpush1.msra.mxu0 0.0
    %708 = vmatprep.subr.mxu0 0.0
    %709 = vmatpush1.msra.mxu0 0.0
    %710 = vmatprep.subr.mxu0 0.0
    %711 = vmatpush1.msra.mxu0 0.0
    %712 = vmatprep.subr.mxu0 0.0
    %713 = vmatpush1.msra.mxu0 0.0
    %714 = vmatprep.subr.mxu0 0.0
    %715 = vmatpush1.msra.mxu0 0.0
    %716 = vmatprep.subr.mxu0 0.0
    %717 = vmatpush1.msra.mxu0 0.0
    %718 = vmatprep.subr.mxu0 0.0
    %719 = vmatpush1.msra.mxu0 0.0
    %720 = vmatprep.subr.mxu0 0.0
    %721 = vmatpush1.msra.mxu0 0.0
    %722 = vmatprep.subr.mxu0 0.0
    %723 = vmatpush1.msra.mxu0 0.0
    %724 = vmatprep.subr.mxu0 0.0
    %725 = vmatpush1.msra.mxu0 0.0
    %726 = vmatprep.subr.mxu0 0.0
    %727 = vmatpush1.msra.mxu0 0.0
    %728 = vmatprep.subr.mxu0 0.0
    %729 = vmatpush1.msra.mxu0 0.0
    %730 = vmatprep.subr.mxu0 0.0
    %731 = vmatpush1.msra.mxu0 0.0
    %732 = vmatprep.mubr.f32.mxu0 0.0
    %733 = vmatmul.mubr.f32.gmra.mrb[0].mxu0 %v666
    %v734 = vpop.f32.mrb[0].mxu0
    %v735 = vadd.f32 0.0, %v734
    %v736 = vpop.f32.mrb[0].mxu0
    %737 = vdwg.mxu0
    %738 = vrot.lane.b32.xlu0 %v152, 56
    %v739 = vpop.permute.xlu0 %738
    %v742 = vsel %vm158, %v661, 0
    %744 = vmatprep.subr.mxu0 0.0
    %745 = vmatpush1.msra.mxu0 %v739
    %746 = vmatprep.subr.mxu0 0.0
    %747 = vmatpush1.msra.mxu0 0.0
    %748 = vmatprep.subr.mxu0 0.0
    %749 = vmatpush1.msra.mxu0 0.0
    %750 = vmatprep.subr.mxu0 0.0
    %751 = vmatpush1.msra.mxu0 0.0
    %752 = vmatprep.subr.mxu0 0.0
    %753 = vmatpush1.msra.mxu0 0.0
    %754 = vmatprep.subr.mxu0 0.0
    %755 = vmatpush1.msra.mxu0 0.0
    %756 = vmatprep.subr.mxu0 0.0
    %757 = vmatpush1.msra.mxu0 0.0
    %758 = vmatprep.subr.mxu0 0.0
    %759 = vmatpush1.msra.mxu0 0.0
    %760 = vmatprep.subr.mxu0 0.0
    %761 = vmatpush1.msra.mxu0 0.0
    %762 = vmatprep.subr.mxu0 0.0
    %763 = vmatpush1.msra.mxu0 0.0
    %764 = vmatprep.subr.mxu0 0.0
    %765 = vmatpush1.msra.mxu0 0.0
    %766 = vmatprep.subr.mxu0 0.0
    %767 = vmatpush1.msra.mxu0 0.0
    %768 = vmatprep.subr.mxu0 0.0
    %769 = vmatpush1.msra.mxu0 0.0
    %770 = vmatprep.subr.mxu0 0.0
    %771 = vmatpush1.msra.mxu0 0.0
    %772 = vmatprep.subr.mxu0 0.0
    %773 = vmatpush1.msra.mxu0 0.0
    %774 = vmatprep.subr.mxu0 0.0
    %775 = vmatpush1.msra.mxu0 0.0
    %776 = vmatprep.subr.mxu0 0.0
    %777 = vmatpush1.msra.mxu0 0.0
    %778 = vmatprep.subr.mxu0 0.0
    %779 = vmatpush1.msra.mxu0 0.0
    %780 = vmatprep.subr.mxu0 0.0
    %781 = vmatpush1.msra.mxu0 0.0
    %782 = vmatprep.subr.mxu0 0.0
    %783 = vmatpush1.msra.mxu0 0.0
    %784 = vmatprep.subr.mxu0 0.0
    %785 = vmatpush1.msra.mxu0 0.0
    %786 = vmatprep.subr.mxu0 0.0
    %787 = vmatpush1.msra.mxu0 0.0
    %788 = vmatprep.subr.mxu0 0.0
    %789 = vmatpush1.msra.mxu0 0.0
    %790 = vmatprep.subr.mxu0 0.0
    %791 = vmatpush1.msra.mxu0 0.0
    %792 = vmatprep.subr.mxu0 0.0
    %793 = vmatpush1.msra.mxu0 0.0
    %794 = vmatprep.subr.mxu0 0.0
    %795 = vmatpush1.msra.mxu0 0.0
    %796 = vmatprep.subr.mxu0 0.0
    %797 = vmatpush1.msra.mxu0 0.0
    %798 = vmatprep.subr.mxu0 0.0
    %799 = vmatpush1.msra.mxu0 0.0
    %800 = vmatprep.subr.mxu0 0.0
    %801 = vmatpush1.msra.mxu0 0.0
    %802 = vmatprep.subr.mxu0 0.0
    %803 = vmatpush1.msra.mxu0 0.0
    %804 = vmatprep.subr.mxu0 0.0
    %805 = vmatpush1.msra.mxu0 0.0
    %806 = vmatprep.subr.mxu0 0.0
    %807 = vmatpush1.msra.mxu0 0.0
    %808 = vmatprep.mubr.f32.mxu0 0.0
    %809 = vmatmul.mubr.f32.gmra.mrb[0].mxu0 %v742
    %v810 = vpop.f32.mrb[0].mxu0
    %v811 = vadd.f32 0.0, %v810
    %v812 = vpop.f32.mrb[0].mxu0
    %813 = vdwg.mxu0
    %814 = vrot.lane.b32.xlu0 %v147, 112
    %v815 = vpop.permute.xlu0 %814
    %816 = vrot.lane.b32.xlu0 %v147, 80
    %v817 = vpop.permute.xlu0 %816
    %v818 = vsel %vm158, %v815, 0
    %v820 = vsel %vm158, %v817, 0
    %822 = vmatprep.subr.mxu0 0.0
    %823 = vmatpush1.xpose.msra.mxu0 %v820
    %824 = vmatprep.subr.mxu0 0.0
    %825 = vmatpush1.xpose.msra.mxu0 0.0
    %826 = vmatprep.subr.mxu0 0.0
    %827 = vmatpush1.xpose.msra.mxu0 0.0
    %828 = vmatprep.subr.mxu0 0.0
    %829 = vmatpush1.xpose.msra.mxu0 0.0
    %830 = vmatprep.subr.mxu0 0.0
    %831 = vmatpush1.xpose.msra.mxu0 0.0
    %832 = vmatprep.subr.mxu0 0.0
    %833 = vmatpush1.xpose.msra.mxu0 0.0
    %834 = vmatprep.subr.mxu0 0.0
    %835 = vmatpush1.xpose.msra.mxu0 0.0
    %836 = vmatprep.subr.mxu0 0.0
    %837 = vmatpush1.xpose.msra.mxu0 0.0
    %838 = vmatprep.subr.mxu0 0.0
    %839 = vmatpush1.xpose.msra.mxu0 0.0
    %840 = vmatprep.subr.mxu0 0.0
    %841 = vmatpush1.xpose.msra.mxu0 0.0
    %842 = vmatprep.subr.mxu0 0.0
    %843 = vmatpush1.xpose.msra.mxu0 0.0
    %844 = vmatprep.subr.mxu0 0.0
    %845 = vmatpush1.xpose.msra.mxu0 0.0
    %846 = vmatprep.subr.mxu0 0.0
    %847 = vmatpush1.xpose.msra.mxu0 0.0
    %848 = vmatprep.subr.mxu0 0.0
    %849 = vmatpush1.xpose.msra.mxu0 0.0
    %850 = vmatprep.subr.mxu0 0.0
    %851 = vmatpush1.xpose.msra.mxu0 0.0
    %852 = vmatprep.subr.mxu0 0.0
    %853 = vmatpush1.xpose.msra.mxu0 0.0
    %854 = vmatprep.subr.mxu0 0.0
    %855 = vmatpush1.xpose.msra.mxu0 0.0
    %856 = vmatprep.subr.mxu0 0.0
    %857 = vmatpush1.xpose.msra.mxu0 0.0
    %858 = vmatprep.subr.mxu0 0.0
    %859 = vmatpush1.xpose.msra.mxu0 0.0
    %860 = vmatprep.subr.mxu0 0.0
    %861 = vmatpush1.xpose.msra.mxu0 0.0
    %862 = vmatprep.subr.mxu0 0.0
    %863 = vmatpush1.xpose.msra.mxu0 0.0
    %864 = vmatprep.subr.mxu0 0.0
    %865 = vmatpush1.xpose.msra.mxu0 0.0
    %866 = vmatprep.subr.mxu0 0.0
    %867 = vmatpush1.xpose.msra.mxu0 0.0
    %868 = vmatprep.subr.mxu0 0.0
    %869 = vmatpush1.xpose.msra.mxu0 0.0
    %870 = vmatprep.subr.mxu0 0.0
    %871 = vmatpush1.xpose.msra.mxu0 0.0
    %872 = vmatprep.subr.mxu0 0.0
    %873 = vmatpush1.xpose.msra.mxu0 0.0
    %874 = vmatprep.subr.mxu0 0.0
    %875 = vmatpush1.xpose.msra.mxu0 0.0
    %876 = vmatprep.subr.mxu0 0.0
    %877 = vmatpush1.xpose.msra.mxu0 0.0
    %878 = vmatprep.subr.mxu0 0.0
    %879 = vmatpush1.xpose.msra.mxu0 0.0
    %880 = vmatprep.subr.mxu0 0.0
    %881 = vmatpush1.xpose.msra.mxu0 0.0
    %882 = vmatprep.subr.mxu0 0.0
    %883 = vmatpush1.xpose.msra.mxu0 0.0
    %884 = vmatprep.subr.mxu0 0.0
    %885 = vmatpush1.xpose.msra.mxu0 0.0
    %886 = vmatprep.mubr.f32.mxu0 0.0
    %887 = vmatmul.mubr.f32.gmra.mrb[0].mxu0 %v818
    %v888 = vpop.f32.mrb[0].mxu0
    %v889 = vadd.f32 0.0, %v888
    %v890 = vpop.f32.mrb[0].mxu0
    %891 = vdwg.mxu0
    %892 = vrot.lane.b32.xlu0 %v152, 112
    %v893 = vpop.permute.xlu0 %892
    %894 = vrot.lane.b32.xlu0 %v152, 80
    %v895 = vpop.permute.xlu0 %894
    %v896 = vsel %vm158, %v893, 0
    %v898 = vsel %vm158, %v895, 0
    %900 = vmatprep.subr.mxu0 0.0
    %901 = vmatpush1.xpose.msra.mxu0 %v898
    %902 = vmatprep.subr.mxu0 0.0
    %903 = vmatpush1.xpose.msra.mxu0 0.0
    %904 = vmatprep.subr.mxu0 0.0
    %905 = vmatpush1.xpose.msra.mxu0 0.0
    %906 = vmatprep.subr.mxu0 0.0
    %907 = vmatpush1.xpose.msra.mxu0 0.0
    %908 = vmatprep.subr.mxu0 0.0
    %909 = vmatpush1.xpose.msra.mxu0 0.0
    %910 = vmatprep.subr.mxu0 0.0
    %911 = vmatpush1.xpose.msra.mxu0 0.0
    %912 = vmatprep.subr.mxu0 0.0
    %913 = vmatpush1.xpose.msra.mxu0 0.0
    %914 = vmatprep.subr.mxu0 0.0
    %915 = vmatpush1.xpose.msra.mxu0 0.0
    %916 = vmatprep.subr.mxu0 0.0
    %917 = vmatpush1.xpose.msra.mxu0 0.0
    %918 = vmatprep.subr.mxu0 0.0
    %919 = vmatpush1.xpose.msra.mxu0 0.0
    %920 = vmatprep.subr.mxu0 0.0
    %921 = vmatpush1.xpose.msra.mxu0 0.0
    %922 = vmatprep.subr.mxu0 0.0
    %923 = vmatpush1.xpose.msra.mxu0 0.0
    %924 = vmatprep.subr.mxu0 0.0
    %925 = vmatpush1.xpose.msra.mxu0 0.0
    %926 = vmatprep.subr.mxu0 0.0
    %927 = vmatpush1.xpose.msra.mxu0 0.0
    %928 = vmatprep.subr.mxu0 0.0
    %929 = vmatpush1.xpose.msra.mxu0 0.0
    %930 = vmatprep.subr.mxu0 0.0
    %931 = vmatpush1.xpose.msra.mxu0 0.0
    %932 = vmatprep.subr.mxu0 0.0
    %933 = vmatpush1.xpose.msra.mxu0 0.0
    %934 = vmatprep.subr.mxu0 0.0
    %935 = vmatpush1.xpose.msra.mxu0 0.0
    %936 = vmatprep.subr.mxu0 0.0
    %937 = vmatpush1.xpose.msra.mxu0 0.0
    %938 = vmatprep.subr.mxu0 0.0
    %939 = vmatpush1.xpose.msra.mxu0 0.0
    %940 = vmatprep.subr.mxu0 0.0
    %941 = vmatpush1.xpose.msra.mxu0 0.0
    %942 = vmatprep.subr.mxu0 0.0
    %943 = vmatpush1.xpose.msra.mxu0 0.0
    %944 = vmatprep.subr.mxu0 0.0
    %945 = vmatpush1.xpose.msra.mxu0 0.0
    %946 = vmatprep.subr.mxu0 0.0
    %947 = vmatpush1.xpose.msra.mxu0 0.0
    %948 = vmatprep.subr.mxu0 0.0
    %949 = vmatpush1.xpose.msra.mxu0 0.0
    %950 = vmatprep.subr.mxu0 0.0
    %951 = vmatpush1.xpose.msra.mxu0 0.0
    %952 = vmatprep.subr.mxu0 0.0
    %953 = vmatpush1.xpose.msra.mxu0 0.0
    %954 = vmatprep.subr.mxu0 0.0
    %955 = vmatpush1.xpose.msra.mxu0 0.0
    %956 = vmatprep.subr.mxu0 0.0
    %957 = vmatpush1.xpose.msra.mxu0 0.0
    %958 = vmatprep.subr.mxu0 0.0
    %959 = vmatpush1.xpose.msra.mxu0 0.0
    %960 = vmatprep.subr.mxu0 0.0
    %961 = vmatpush1.xpose.msra.mxu0 0.0
    %962 = vmatprep.subr.mxu0 0.0
    %963 = vmatpush1.xpose.msra.mxu0 0.0
    %964 = vmatprep.mubr.f32.mxu0 0.0
    %965 = vmatmul.mubr.f32.gmra.mrb[0].mxu0 %v896
    %v966 = vpop.f32.mrb[0].mxu0
    %v967 = vadd.f32 0.0, %v966
    %v968 = vpop.f32.mrb[0].mxu0
    %969 = vdwg.mxu0
    %v970 = vsel %vm158, %v889, -inf
    %971 = vmax.xlane.f32.xlu0 %v970
    %v972 = vpop.xlane.xlu0 %971
    %v973 = vsel %vm158, %v967, -inf
    %974 = vmax.xlane.f32.xlu0 %v973
    %v975 = vpop.xlane.xlu0 %974
    %v976 = vsub.f32 %v889, %v972
    %v977 = vsub.f32 %v967, %v975
    %v978 = vmul.f32 %v976, 1.442695
    %v979 = vpow.pop %v978
    %v980 = vmul.f32 %v977, 1.442695
    %v981 = vpow.pop %v980
    %v982 = vsel %vm158, %v979, 0.0
    %983 = vadd.xlane.f32.xlu0 %v982
    %v984 = vpop.xlane.xlu0 %983
    %v985 = vsel %vm158, %v981, 0.0
    %986 = vadd.xlane.f32.xlu0 %v985
    %v987 = vpop.xlane.xlu0 %986
    %v988 = vrcp.pop %v984
    %v989 = vrcp.pop %v987
    %v990 = vmul.f32 %v979, %v988
    %v991 = vmul.f32 %v981, %v989
    %992 = vrot.lane.b32.xlu0 %v147, 48
    %v993 = vpop.permute.xlu0 %992
    %v996 = vsel %vm158, %v990, 0
    %998 = vmatprep.subr.mxu0 0.0
    %999 = vmatpush1.msra.mxu0 %v993
    %1000 = vmatprep.subr.mxu0 0.0
    %1001 = vmatpush1.msra.mxu0 0.0
    %1002 = vmatprep.subr.mxu0 0.0
    %1003 = vmatpush1.msra.mxu0 0.0
    %1004 = vmatprep.subr.mxu0 0.0
    %1005 = vmatpush1.msra.mxu0 0.0
    %1006 = vmatprep.subr.mxu0 0.0
    %1007 = vmatpush1.msra.mxu0 0.0
    %1008 = vmatprep.subr.mxu0 0.0
    %1009 = vmatpush1.msra.mxu0 0.0
    %1010 = vmatprep.subr.mxu0 0.0
    %1011 = vmatpush1.msra.mxu0 0.0
    %1012 = vmatprep.subr.mxu0 0.0
    %1013 = vmatpush1.msra.mxu0 0.0
    %1014 = vmatprep.subr.mxu0 0.0
    %1015 = vmatpush1.msra.mxu0 0.0
    %1016 = vmatprep.subr.mxu0 0.0
    %1017 = vmatpush1.msra.mxu0 0.0
    %1018 = vmatprep.subr.mxu0 0.0
    %1019 = vmatpush1.msra.mxu0 0.0
    %1020 = vmatprep.subr.mxu0 0.0
    %1021 = vmatpush1.msra.mxu0 0.0
    %1022 = vmatprep.subr.mxu0 0.0
    %1023 = vmatpush1.msra.mxu0 0.0
    %1024 = vmatprep.subr.mxu0 0.0
    %1025 = vmatpush1.msra.mxu0 0.0
    %1026 = vmatprep.subr.mxu0 0.0
    %1027 = vmatpush1.msra.mxu0 0.0
    %1028 = vmatprep.subr.mxu0 0.0
    %1029 = vmatpush1.msra.mxu0 0.0
    %1030 = vmatprep.subr.mxu0 0.0
    %1031 = vmatpush1.msra.mxu0 0.0
    %1032 = vmatprep.subr.mxu0 0.0
    %1033 = vmatpush1.msra.mxu0 0.0
    %1034 = vmatprep.subr.mxu0 0.0
    %1035 = vmatpush1.msra.mxu0 0.0
    %1036 = vmatprep.subr.mxu0 0.0
    %1037 = vmatpush1.msra.mxu0 0.0
    %1038 = vmatprep.subr.mxu0 0.0
    %1039 = vmatpush1.msra.mxu0 0.0
    %1040 = vmatprep.subr.mxu0 0.0
    %1041 = vmatpush1.msra.mxu0 0.0
    %1042 = vmatprep.subr.mxu0 0.0
    %1043 = vmatpush1.msra.mxu0 0.0
    %1044 = vmatprep.subr.mxu0 0.0
    %1045 = vmatpush1.msra.mxu0 0.0
    %1046 = vmatprep.subr.mxu0 0.0
    %1047 = vmatpush1.msra.mxu0 0.0
    %1048 = vmatprep.subr.mxu0 0.0
    %1049 = vmatpush1.msra.mxu0 0.0
    %1050 = vmatprep.subr.mxu0 0.0
    %1051 = vmatpush1.msra.mxu0 0.0
    %1052 = vmatprep.subr.mxu0 0.0
    %1053 = vmatpush1.msra.mxu0 0.0
    %1054 = vmatprep.subr.mxu0 0.0
    %1055 = vmatpush1.msra.mxu0 0.0
    %1056 = vmatprep.subr.mxu0 0.0
    %1057 = vmatpush1.msra.mxu0 0.0
    %1058 = vmatprep.subr.mxu0 0.0
    %1059 = vmatpush1.msra.mxu0 0.0
    %1060 = vmatprep.subr.mxu0 0.0
    %1061 = vmatpush1.msra.mxu0 0.0
    %1062 = vmatprep.mubr.f32.mxu0 0.0
    %1063 = vmatmul.mubr.f32.gmra.mrb[0].mxu0 %v996
    %v1064 = vpop.f32.mrb[0].mxu0
    %v1065 = vadd.f32 0.0, %v1064
    %v1066 = vpop.f32.mrb[0].mxu0
    %1067 = vdwg.mxu0
    %1068 = vrot.lane.b32.xlu0 %v152, 48
    %v1069 = vpop.permute.xlu0 %1068
    %v1072 = vsel %vm158, %v991, 0
    %1074 = vmatprep.subr.mxu0 0.0
    %1075 = vmatpush1.msra.mxu0 %v1069
    %1076 = vmatprep.subr.mxu0 0.0
    %1077 = vmatpush1.msra.mxu0 0.0
    %1078 = vmatprep.subr.mxu0 0.0
    %1079 = vmatpush1.msra.mxu0 0.0
    %1080 = vmatprep.subr.mxu0 0.0
    %1081 = vmatpush1.msra.mxu0 0.0
    %1082 = vmatprep.subr.mxu0 0.0
    %1083 = vmatpush1.msra.mxu0 0.0
    %1084 = vmatprep.subr.mxu0 0.0
    %1085 = vmatpush1.msra.mxu0 0.0
    %1086 = vmatprep.subr.mxu0 0.0
    %1087 = vmatpush1.msra.mxu0 0.0
    %1088 = vmatprep.subr.mxu0 0.0
    %1089 = vmatpush1.msra.mxu0 0.0
    %1090 = vmatprep.subr.mxu0 0.0
    %1091 = vmatpush1.msra.mxu0 0.0
    %1092 = vmatprep.subr.mxu0 0.0
    %1093 = vmatpush1.msra.mxu0 0.0
    %1094 = vmatprep.subr.mxu0 0.0
    %1095 = vmatpush1.msra.mxu0 0.0
    %1096 = vmatprep.subr.mxu0 0.0
    %1097 = vmatpush1.msra.mxu0 0.0
    %1098 = vmatprep.subr.mxu0 0.0
    %1099 = vmatpush1.msra.mxu0 0.0
    %1100 = vmatprep.subr.mxu0 0.0
    %1101 = vmatpush1.msra.mxu0 0.0
    %1102 = vmatprep.subr.mxu0 0.0
    %1103 = vmatpush1.msra.mxu0 0.0
    %1104 = vmatprep.subr.mxu0 0.0
    %1105 = vmatpush1.msra.mxu0 0.0
    %1106 = vmatprep.subr.mxu0 0.0
    %1107 = vmatpush1.msra.mxu0 0.0
    %1108 = vmatprep.subr.mxu0 0.0
    %1109 = vmatpush1.msra.mxu0 0.0
    %1110 = vmatprep.subr.mxu0 0.0
    %1111 = vmatpush1.msra.mxu0 0.0
    %1112 = vmatprep.subr.mxu0 0.0
    %1113 = vmatpush1.msra.mxu0 0.0
    %1114 = vmatprep.subr.mxu0 0.0
    %1115 = vmatpush1.msra.mxu0 0.0
    %1116 = vmatprep.subr.mxu0 0.0
    %1117 = vmatpush1.msra.mxu0 0.0
    %1118 = vmatprep.subr.mxu0 0.0
    %1119 = vmatpush1.msra.mxu0 0.0
    %1120 = vmatprep.subr.mxu0 0.0
    %1121 = vmatpush1.msra.mxu0 0.0
    %1122 = vmatprep.subr.mxu0 0.0
    %1123 = vmatpush1.msra.mxu0 0.0
    %1124 = vmatprep.subr.mxu0 0.0
    %1125 = vmatpush1.msra.mxu0 0.0
    %1126 = vmatprep.subr.mxu0 0.0
    %1127 = vmatpush1.msra.mxu0 0.0
    %1128 = vmatprep.subr.mxu0 0.0
    %1129 = vmatpush1.msra.mxu0 0.0
    %1130 = vmatprep.subr.mxu0 0.0
    %1131 = vmatpush1.msra.mxu0 0.0
    %1132 = vmatprep.subr.mxu0 0.0
    %1133 = vmatpush1.msra.mxu0 0.0
    %1134 = vmatprep.subr.mxu0 0.0
    %1135 = vmatpush1.msra.mxu0 0.0
    %1136 = vmatprep.subr.mxu0 0.0
    %1137 = vmatpush1.msra.mxu0 0.0
    %1138 = vmatprep.mubr.f32.mxu0 0.0
    %1139 = vmatmul.mubr.f32.gmra.mrb[0].mxu0 %v1072
    %v1140 = vpop.f32.mrb[0].mxu0
    %v1141 = vadd.f32 0.0, %v1140
    %v1142 = vpop.f32.mrb[0].mxu0
    %1143 = vdwg.mxu0
    %1144 = vrot.lane.b32.xlu0 %v147, 104
    %v1145 = vpop.permute.xlu0 %1144
    %1146 = vrot.lane.b32.xlu0 %v147, 72
    %v1147 = vpop.permute.xlu0 %1146
    %v1148 = vsel %vm158, %v1145, 0
    %v1150 = vsel %vm158, %v1147, 0
    %1152 = vmatprep.subr.mxu0 0.0
    %1153 = vmatpush1.xpose.msra.mxu0 %v1150
    %1154 = vmatprep.subr.mxu0 0.0
    %1155 = vmatpush1.xpose.msra.mxu0 0.0
    %1156 = vmatprep.subr.mxu0 0.0
    %1157 = vmatpush1.xpose.msra.mxu0 0.0
    %1158 = vmatprep.subr.mxu0 0.0
    %1159 = vmatpush1.xpose.msra.mxu0 0.0
    %1160 = vmatprep.subr.mxu0 0.0
    %1161 = vmatpush1.xpose.msra.mxu0 0.0
    %1162 = vmatprep.subr.mxu0 0.0
    %1163 = vmatpush1.xpose.msra.mxu0 0.0
    %1164 = vmatprep.subr.mxu0 0.0
    %1165 = vmatpush1.xpose.msra.mxu0 0.0
    %1166 = vmatprep.subr.mxu0 0.0
    %1167 = vmatpush1.xpose.msra.mxu0 0.0
    %1168 = vmatprep.subr.mxu0 0.0
    %1169 = vmatpush1.xpose.msra.mxu0 0.0
    %1170 = vmatprep.subr.mxu0 0.0
    %1171 = vmatpush1.xpose.msra.mxu0 0.0
    %1172 = vmatprep.subr.mxu0 0.0
    %1173 = vmatpush1.xpose.msra.mxu0 0.0
    %1174 = vmatprep.subr.mxu0 0.0
    %1175 = vmatpush1.xpose.msra.mxu0 0.0
    %1176 = vmatprep.subr.mxu0 0.0
    %1177 = vmatpush1.xpose.msra.mxu0 0.0
    %1178 = vmatprep.subr.mxu0 0.0
    %1179 = vmatpush1.xpose.msra.mxu0 0.0
    %1180 = vmatprep.subr.mxu0 0.0
    %1181 = vmatpush1.xpose.msra.mxu0 0.0
    %1182 = vmatprep.subr.mxu0 0.0
    %1183 = vmatpush1.xpose.msra.mxu0 0.0
    %1184 = vmatprep.subr.mxu0 0.0
    %1185 = vmatpush1.xpose.msra.mxu0 0.0
    %1186 = vmatprep.subr.mxu0 0.0
    %1187 = vmatpush1.xpose.msra.mxu0 0.0
    %1188 = vmatprep.subr.mxu0 0.0
    %1189 = vmatpush1.xpose.msra.mxu0 0.0
    %1190 = vmatprep.subr.mxu0 0.0
    %1191 = vmatpush1.xpose.msra.mxu0 0.0
    %1192 = vmatprep.subr.mxu0 0.0
    %1193 = vmatpush1.xpose.msra.mxu0 0.0
    %1194 = vmatprep.subr.mxu0 0.0
    %1195 = vmatpush1.xpose.msra.mxu0 0.0
    %1196 = vmatprep.subr.mxu0 0.0
    %1197 = vmatpush1.xpose.msra.mxu0 0.0
    %1198 = vmatprep.subr.mxu0 0.0
    %1199 = vmatpush1.xpose.msra.mxu0 0.0
    %1200 = vmatprep.subr.mxu0 0.0
    %1201 = vmatpush1.xpose.msra.mxu0 0.0
    %1202 = vmatprep.subr.mxu0 0.0
    %1203 = vmatpush1.xpose.msra.mxu0 0.0
    %1204 = vmatprep.subr.mxu0 0.0
    %1205 = vmatpush1.xpose.msra.mxu0 0.0
    %1206 = vmatprep.subr.mxu0 0.0
    %1207 = vmatpush1.xpose.msra.mxu0 0.0
    %1208 = vmatprep.subr.mxu0 0.0
    %1209 = vmatpush1.xpose.msra.mxu0 0.0
    %1210 = vmatprep.subr.mxu0 0.0
    %1211 = vmatpush1.xpose.msra.mxu0 0.0
    %1212 = vmatprep.subr.mxu0 0.0
    %1213 = vmatpush1.xpose.msra.mxu0 0.0
    %1214 = vmatprep.subr.mxu0 0.0
    %1215 = vmatpush1.xpose.msra.mxu0 0.0
    %1216 = vmatprep.mubr.f32.mxu0 0.0
    %1217 = vmatmul.mubr.f32.gmra.mrb[0].mxu0 %v1148
    %v1218 = vpop.f32.mrb[0].mxu0
    %v1219 = vadd.f32 0.0, %v1218
    %v1220 = vpop.f32.mrb[0].mxu0
    %1221 = vdwg.mxu0
    %1222 = vrot.lane.b32.xlu0 %v152, 104
    %v1223 = vpop.permute.xlu0 %1222
    %1224 = vrot.lane.b32.xlu0 %v152, 72
    %v1225 = vpop.permute.xlu0 %1224
    %v1226 = vsel %vm158, %v1223, 0
    %v1228 = vsel %vm158, %v1225, 0
    %1230 = vmatprep.subr.mxu0 0.0
    %1231 = vmatpush1.xpose.msra.mxu0 %v1228
    %1232 = vmatprep.subr.mxu0 0.0
    %1233 = vmatpush1.xpose.msra.mxu0 0.0
    %1234 = vmatprep.subr.mxu0 0.0
    %1235 = vmatpush1.xpose.msra.mxu0 0.0
    %1236 = vmatprep.subr.mxu0 0.0
    %1237 = vmatpush1.xpose.msra.mxu0 0.0
    %1238 = vmatprep.subr.mxu0 0.0
    %1239 = vmatpush1.xpose.msra.mxu0 0.0
    %1240 = vmatprep.subr.mxu0 0.0
    %1241 = vmatpush1.xpose.msra.mxu0 0.0
    %1242 = vmatprep.subr.mxu0 0.0
    %1243 = vmatpush1.xpose.msra.mxu0 0.0
    %1244 = vmatprep.subr.mxu0 0.0
    %1245 = vmatpush1.xpose.msra.mxu0 0.0
    %1246 = vmatprep.subr.mxu0 0.0
    %1247 = vmatpush1.xpose.msra.mxu0 0.0
    %1248 = vmatprep.subr.mxu0 0.0
    %1249 = vmatpush1.xpose.msra.mxu0 0.0
    %1250 = vmatprep.subr.mxu0 0.0
    %1251 = vmatpush1.xpose.msra.mxu0 0.0
    %1252 = vmatprep.subr.mxu0 0.0
    %1253 = vmatpush1.xpose.msra.mxu0 0.0
    %1254 = vmatprep.subr.mxu0 0.0
    %1255 = vmatpush1.xpose.msra.mxu0 0.0
    %1256 = vmatprep.subr.mxu0 0.0
    %1257 = vmatpush1.xpose.msra.mxu0 0.0
    %1258 = vmatprep.subr.mxu0 0.0
    %1259 = vmatpush1.xpose.msra.mxu0 0.0
    %1260 = vmatprep.subr.mxu0 0.0
    %1261 = vmatpush1.xpose.msra.mxu0 0.0
    %1262 = vmatprep.subr.mxu0 0.0
    %1263 = vmatpush1.xpose.msra.mxu0 0.0
    %1264 = vmatprep.subr.mxu0 0.0
    %1265 = vmatpush1.xpose.msra.mxu0 0.0
    %1266 = vmatprep.subr.mxu0 0.0
    %1267 = vmatpush1.xpose.msra.mxu0 0.0
    %1268 = vmatprep.subr.mxu0 0.0
    %1269 = vmatpush1.xpose.msra.mxu0 0.0
    %1270 = vmatprep.subr.mxu0 0.0
    %1271 = vmatpush1.xpose.msra.mxu0 0.0
    %1272 = vmatprep.subr.mxu0 0.0
    %1273 = vmatpush1.xpose.msra.mxu0 0.0
    %1274 = vmatprep.subr.mxu0 0.0
    %1275 = vmatpush1.xpose.msra.mxu0 0.0
    %1276 = vmatprep.subr.mxu0 0.0
    %1277 = vmatpush1.xpose.msra.mxu0 0.0
    %1278 = vmatprep.subr.mxu0 0.0
    %1279 = vmatpush1.xpose.msra.mxu0 0.0
    %1280 = vmatprep.subr.mxu0 0.0
    %1281 = vmatpush1.xpose.msra.mxu0 0.0
    %1282 = vmatprep.subr.mxu0 0.0
    %1283 = vmatpush1.xpose.msra.mxu0 0.0
    %1284 = vmatprep.subr.mxu0 0.0
    %1285 = vmatpush1.xpose.msra.mxu0 0.0
    %1286 = vmatprep.subr.mxu0 0.0
    %1287 = vmatpush1.xpose.msra.mxu0 0.0
    %1288 = vmatprep.subr.mxu0 0.0
    %1289 = vmatpush1.xpose.msra.mxu0 0.0
    %1290 = vmatprep.subr.mxu0 0.0
    %1291 = vmatpush1.xpose.msra.mxu0 0.0
    %1292 = vmatprep.subr.mxu0 0.0
    %1293 = vmatpush1.xpose.msra.mxu0 0.0
    %1294 = vmatprep.mubr.f32.mxu0 0.0
    %1295 = vmatmul.mubr.f32.gmra.mrb[0].mxu0 %v1226
    %v1296 = vpop.f32.mrb[0].mxu0
    %v1297 = vadd.f32 0.0, %v1296
    %v1298 = vpop.f32.mrb[0].mxu0
    %1299 = vdwg.mxu0
    %v1300 = vsel %vm158, %v1219, -inf
    %1301 = vmax.xlane.f32.xlu0 %v1300
    %v1302 = vpop.xlane.xlu0 %1301
    %v1303 = vsel %vm158, %v1297, -inf
    %1304 = vmax.xlane.f32.xlu0 %v1303
    %v1305 = vpop.xlane.xlu0 %1304
    %v1306 = vsub.f32 %v1219, %v1302
    %v1307 = vsub.f32 %v1297, %v1305
    %v1308 = vmul.f32 %v1306, 1.442695
    %v1309 = vpow.pop %v1308
    %v1310 = vmul.f32 %v1307, 1.442695
    %v1311 = vpow.pop %v1310
    %v1312 = vsel %vm158, %v1309, 0.0
    %1313 = vadd.xlane.f32.xlu0 %v1312
    %v1314 = vpop.xlane.xlu0 %1313
    %v1315 = vsel %vm158, %v1311, 0.0
    %1316 = vadd.xlane.f32.xlu0 %v1315
    %v1317 = vpop.xlane.xlu0 %1316
    %v1318 = vrcp.pop %v1314
    %v1319 = vrcp.pop %v1317
    %v1320 = vmul.f32 %v1309, %v1318
    %v1321 = vmul.f32 %v1311, %v1319
    %1322 = vrot.lane.b32.xlu0 %v147, 40
    %v1323 = vpop.permute.xlu0 %1322
    %v1326 = vsel %vm158, %v1320, 0
    %1328 = vmatprep.subr.mxu0 0.0
    %1329 = vmatpush1.msra.mxu0 %v1323
    %1330 = vmatprep.subr.mxu0 0.0
    %1331 = vmatpush1.msra.mxu0 0.0
    %1332 = vmatprep.subr.mxu0 0.0
    %1333 = vmatpush1.msra.mxu0 0.0
    %1334 = vmatprep.subr.mxu0 0.0
    %1335 = vmatpush1.msra.mxu0 0.0
    %1336 = vmatprep.subr.mxu0 0.0
    %1337 = vmatpush1.msra.mxu0 0.0
    %1338 = vmatprep.subr.mxu0 0.0
    %1339 = vmatpush1.msra.mxu0 0.0
    %1340 = vmatprep.subr.mxu0 0.0
    %1341 = vmatpush1.msra.mxu0 0.0
    %1342 = vmatprep.subr.mxu0 0.0
    %1343 = vmatpush1.msra.mxu0 0.0
    %1344 = vmatprep.subr.mxu0 0.0
    %1345 = vmatpush1.msra.mxu0 0.0
    %1346 = vmatprep.subr.mxu0 0.0
    %1347 = vmatpush1.msra.mxu0 0.0
    %1348 = vmatprep.subr.mxu0 0.0
    %1349 = vmatpush1.msra.mxu0 0.0
    %1350 = vmatprep.subr.mxu0 0.0
    %1351 = vmatpush1.msra.mxu0 0.0
    %1352 = vmatprep.subr.mxu0 0.0
    %1353 = vmatpush1.msra.mxu0 0.0
    %1354 = vmatprep.subr.mxu0 0.0
    %1355 = vmatpush1.msra.mxu0 0.0
    %1356 = vmatprep.subr.mxu0 0.0
    %1357 = vmatpush1.msra.mxu0 0.0
    %1358 = vmatprep.subr.mxu0 0.0
    %1359 = vmatpush1.msra.mxu0 0.0
    %1360 = vmatprep.subr.mxu0 0.0
    %1361 = vmatpush1.msra.mxu0 0.0
    %1362 = vmatprep.subr.mxu0 0.0
    %1363 = vmatpush1.msra.mxu0 0.0
    %1364 = vmatprep.subr.mxu0 0.0
    %1365 = vmatpush1.msra.mxu0 0.0
    %1366 = vmatprep.subr.mxu0 0.0
    %1367 = vmatpush1.msra.mxu0 0.0
    %1368 = vmatprep.subr.mxu0 0.0
    %1369 = vmatpush1.msra.mxu0 0.0
    %1370 = vmatprep.subr.mxu0 0.0
    %1371 = vmatpush1.msra.mxu0 0.0
    %1372 = vmatprep.subr.mxu0 0.0
    %1373 = vmatpush1.msra.mxu0 0.0
    %1374 = vmatprep.subr.mxu0 0.0
    %1375 = vmatpush1.msra.mxu0 0.0
    %1376 = vmatprep.subr.mxu0 0.0
    %1377 = vmatpush1.msra.mxu0 0.0
    %1378 = vmatprep.subr.mxu0 0.0
    %1379 = vmatpush1.msra.mxu0 0.0
    %1380 = vmatprep.subr.mxu0 0.0
    %1381 = vmatpush1.msra.mxu0 0.0
    %1382 = vmatprep.subr.mxu0 0.0
    %1383 = vmatpush1.msra.mxu0 0.0
    %1384 = vmatprep.subr.mxu0 0.0
    %1385 = vmatpush1.msra.mxu0 0.0
    %1386 = vmatprep.subr.mxu0 0.0
    %1387 = vmatpush1.msra.mxu0 0.0
    %1388 = vmatprep.subr.mxu0 0.0
    %1389 = vmatpush1.msra.mxu0 0.0
    %1390 = vmatprep.subr.mxu0 0.0
    %1391 = vmatpush1.msra.mxu0 0.0
    %1392 = vmatprep.mubr.f32.mxu0 0.0
    %1393 = vmatmul.mubr.f32.gmra.mrb[0].mxu0 %v1326
    %v1394 = vpop.f32.mrb[0].mxu0
    %v1395 = vadd.f32 0.0, %v1394
    %v1396 = vpop.f32.mrb[0].mxu0
    %1397 = vdwg.mxu0
    %1398 = vrot.lane.b32.xlu0 %v152, 40
    %v1399 = vpop.permute.xlu0 %1398
    %v1402 = vsel %vm158, %v1321, 0
    %1404 = vmatprep.subr.mxu0 0.0
    %1405 = vmatpush1.msra.mxu0 %v1399
    %1406 = vmatprep.subr.mxu0 0.0
    %1407 = vmatpush1.msra.mxu0 0.0
    %1408 = vmatprep.subr.mxu0 0.0
    %1409 = vmatpush1.msra.mxu0 0.0
    %1410 = vmatprep.subr.mxu0 0.0
    %1411 = vmatpush1.msra.mxu0 0.0
    %1412 = vmatprep.subr.mxu0 0.0
    %1413 = vmatpush1.msra.mxu0 0.0
    %1414 = vmatprep.subr.mxu0 0.0
    %1415 = vmatpush1.msra.mxu0 0.0
    %1416 = vmatprep.subr.mxu0 0.0
    %1417 = vmatpush1.msra.mxu0 0.0
    %1418 = vmatprep.subr.mxu0 0.0
    %1419 = vmatpush1.msra.mxu0 0.0
    %1420 = vmatprep.subr.mxu0 0.0
    %1421 = vmatpush1.msra.mxu0 0.0
    %1422 = vmatprep.subr.mxu0 0.0
    %1423 = vmatpush1.msra.mxu0 0.0
    %1424 = vmatprep.subr.mxu0 0.0
    %1425 = vmatpush1.msra.mxu0 0.0
    %1426 = vmatprep.subr.mxu0 0.0
    %1427 = vmatpush1.msra.mxu0 0.0
    %1428 = vmatprep.subr.mxu0 0.0
    %1429 = vmatpush1.msra.mxu0 0.0
    %1430 = vmatprep.subr.mxu0 0.0
    %1431 = vmatpush1.msra.mxu0 0.0
    %1432 = vmatprep.subr.mxu0 0.0
    %1433 = vmatpush1.msra.mxu0 0.0
    %1434 = vmatprep.subr.mxu0 0.0
    %1435 = vmatpush1.msra.mxu0 0.0
    %1436 = vmatprep.subr.mxu0 0.0
    %1437 = vmatpush1.msra.mxu0 0.0
    %1438 = vmatprep.subr.mxu0 0.0
    %1439 = vmatpush1.msra.mxu0 0.0
    %1440 = vmatprep.subr.mxu0 0.0
    %1441 = vmatpush1.msra.mxu0 0.0
    %1442 = vmatprep.subr.mxu0 0.0
    %1443 = vmatpush1.msra.mxu0 0.0
    %1444 = vmatprep.subr.mxu0 0.0
    %1445 = vmatpush1.msra.mxu0 0.0
    %1446 = vmatprep.subr.mxu0 0.0
    %1447 = vmatpush1.msra.mxu0 0.0
    %1448 = vmatprep.subr.mxu0 0.0
    %1449 = vmatpush1.msra.mxu0 0.0
    %1450 = vmatprep.subr.mxu0 0.0
    %1451 = vmatpush1.msra.mxu0 0.0
    %1452 = vmatprep.subr.mxu0 0.0
    %1453 = vmatpush1.msra.mxu0 0.0
    %1454 = vmatprep.subr.mxu0 0.0
    %1455 = vmatpush1.msra.mxu0 0.0
    %1456 = vmatprep.subr.mxu0 0.0
    %1457 = vmatpush1.msra.mxu0 0.0
    %1458 = vmatprep.subr.mxu0 0.0
    %1459 = vmatpush1.msra.mxu0 0.0
    %1460 = vmatprep.subr.mxu0 0.0
    %1461 = vmatpush1.msra.mxu0 0.0
    %1462 = vmatprep.subr.mxu0 0.0
    %1463 = vmatpush1.msra.mxu0 0.0
    %1464 = vmatprep.subr.mxu0 0.0
    %1465 = vmatpush1.msra.mxu0 0.0
    %1466 = vmatprep.subr.mxu0 0.0
    %1467 = vmatpush1.msra.mxu0 0.0
    %1468 = vmatprep.mubr.f32.mxu0 0.0
    %1469 = vmatmul.mubr.f32.gmra.mrb[0].mxu0 %v1402
    %v1470 = vpop.f32.mrb[0].mxu0
    %v1471 = vadd.f32 0.0, %v1470
    %v1472 = vpop.f32.mrb[0].mxu0
    %1473 = vdwg.mxu0
    %1476 = vrot.lane.b32.xlu0 %v735, 8
    %v1477 = vpop.permute.xlu0 %1476
    %1478 = vrot.lane.b32.xlu0 %v811, 8
    %v1479 = vpop.permute.xlu0 %1478
    %1484 = vrot.lane.b32.xlu0 %v1065, 16
    %v1485 = vpop.permute.xlu0 %1484
    %1486 = vrot.lane.b32.xlu0 %v1141, 16
    %v1487 = vpop.permute.xlu0 %1486
    %1492 = vrot.lane.b32.xlu0 %v1395, 24
    %v1493 = vpop.permute.xlu0 %1492
    %1494 = vrot.lane.b32.xlu0 %v1471, 24
    %v1495 = vpop.permute.xlu0 %1494
    %v1498 = vsel %vm158, %v405, %v1477
    %v1499 = vsel %vm158, %v481, %v1479
    %vm1500 = vcmask 130048
    %v1501 = vsel %vm1500, %v1498, %v1485
    %v1502 = vsel %vm1500, %v1499, %v1487
    %vm1503 = vcmask 195584
    %v1504 = vsel %vm1503, %v1501, %v1493
    %v1505 = vsel %vm1503, %v1502, %v1495
    %v1506 = vld [vmem:[#allocation7] sm:$0xff]
    %v1507 = vld [vmem:[#allocation7 + $0x8] sm:$0xff]
    %v1508 = vld [vmem:[#allocation7 + $0x10] sm:$0xff]
    %v1509 = vld [vmem:[#allocation7 + $0x18] sm:$0xff]
    %v1510 = vld [vmem:[%s3] sm:$0x1]
    %v1512 = vlaneseq
    %v1513 = vshrl.u32 %v1512, 7
    %v1514 = vsub.s32 0, %v1513
    %v1515 = vrot.slane %v1510, %v1514
    %vm1517 = vcmask 261120
    %v1519 = vsel %vm1517, %v1504, 0
    %v1522 = vsel %vm1517, %v1505, 0
    %1524 = vmatprep.subr.mxu0 0.0
    %1525 = vmatpush1.msra.mxu0 %v1506
    %1526 = vmatprep.subr.mxu0 0.0
    %1527 = vmatpush1.msra.mxu0 %v1507
    %1528 = vmatprep.subr.mxu0 0.0
    %1529 = vmatpush1.msra.mxu0 %v1508
    %1530 = vmatprep.subr.mxu0 0.0
    %1531 = vmatpush1.msra.mxu0 %v1509
    %1532 = vmatprep.subr.mxu0 0.0
    %1533 = vmatpush1.msra.mxu0 0.0
    %1534 = vmatprep.subr.mxu0 0.0
    %1535 = vmatpush1.msra.mxu0 0.0
    %1536 = vmatprep.subr.mxu0 0.0
    %1537 = vmatpush1.msra.mxu0 0.0
    %1538 = vmatprep.subr.mxu0 0.0
    %1539 = vmatpush1.msra.mxu0 0.0
    %1540 = vmatprep.subr.mxu0 0.0
    %1541 = vmatpush1.msra.mxu0 0.0
    %1542 = vmatprep.subr.mxu0 0.0
    %1543 = vmatpush1.msra.mxu0 0.0
    %1544 = vmatprep.subr.mxu0 0.0
    %1545 = vmatpush1.msra.mxu0 0.0
    %1546 = vmatprep.subr.mxu0 0.0
    %1547 = vmatpush1.msra.mxu0 0.0
    %1548 = vmatprep.subr.mxu0 0.0
    %1549 = vmatpush1.msra.mxu0 0.0
    %1550 = vmatprep.subr.mxu0 0.0
    %1551 = vmatpush1.msra.mxu0 0.0
    %1552 = vmatprep.subr.mxu0 0.0
    %1553 = vmatpush1.msra.mxu0 0.0
    %1554 = vmatprep.subr.mxu0 0.0
    %1555 = vmatpush1.msra.mxu0 0.0
    %1556 = vmatprep.subr.mxu0 0.0
    %1557 = vmatpush1.msra.mxu0 0.0
    %1558 = vmatprep.subr.mxu0 0.0
    %1559 = vmatpush1.msra.mxu0 0.0
    %1560 = vmatprep.subr.mxu0 0.0
    %1561 = vmatpush1.msra.mxu0 0.0
    %1562 = vmatprep.subr.mxu0 0.0
    %1563 = vmatpush1.msra.mxu0 0.0
    %1564 = vmatprep.subr.mxu0 0.0
    %1565 = vmatpush1.msra.mxu0 0.0
    %1566 = vmatprep.subr.mxu0 0.0
    %1567 = vmatpush1.msra.mxu0 0.0
    %1568 = vmatprep.subr.mxu0 0.0
    %1569 = vmatpush1.msra.mxu0 0.0
    %1570 = vmatprep.subr.mxu0 0.0
    %1571 = vmatpush1.msra.mxu0 0.0
    %1572 = vmatprep.subr.mxu0 0.0
    %1573 = vmatpush1.msra.mxu0 0.0
    %1574 = vmatprep.subr.mxu0 0.0
    %1575 = vmatpush1.msra.mxu0 0.0
    %1576 = vmatprep.subr.mxu0 0.0
    %1577 = vmatpush1.msra.mxu0 0.0
    %1578 = vmatprep.subr.mxu0 0.0
    %1579 = vmatpush1.msra.mxu0 0.0
    %1580 = vmatprep.subr.mxu0 0.0
    %1581 = vmatpush1.msra.mxu0 0.0
    %1582 = vmatprep.subr.mxu0 0.0
    %1583 = vmatpush1.msra.mxu0 0.0
    %1584 = vmatprep.subr.mxu0 0.0
    %1585 = vmatpush1.msra.mxu0 0.0
    %1586 = vmatprep.subr.mxu0 0.0
    %1587 = vmatpush1.msra.mxu0 0.0
    %1588 = vmatprep.mubr.f32.mxu0 0.0
    %1589 = vmatmul.mubr.f32.gmra.mrb[0].mxu0 %v1519
    %v1590 = vpop.f32.mrb[0].mxu0
    %v1591 = vadd.f32 %v1515, %v1590
    %v1592 = vpop.f32.mrb[0].mxu0
    %1593 = vmatprep.mubr.f32.mxu0 0.0
    %1594 = vmatmul.mubr.f32.gmra.mrb[0].mxu0 %v1522
    %v1595 = vpop.f32.mrb[0].mxu0
    %v1596 = vadd.f32 %v1515, %v1595
    %v1597 = vpop.f32.mrb[0].mxu0
    %1598 = vdwg.mxu0
    %v1601 = vrot.slane %v1596, 7
    %vm1602 = vcmask 1041409
    %v1603 = vsel %vm1602, %v1601, %v1591
    %v1605 = vrot.slane %v1591, 1
    %v1606 = vsel %vm1602, %v1596, %v1605
    %1607 = vrot.lane.b32.xlu0 %v1606, 32
    %v1608 = vpop.permute.xlu0 %1607
    %v1610 = vrot.slane %v1591, 2
    %v1611 = vrot.slane %v1596, 1
    %v1612 = vsel %vm1602, %v1611, %v1610
    %1613 = vrot.lane.b32.xlu0 %v1612, 64
    %v1614 = vpop.permute.xlu0 %1613
    %v1616 = vrot.slane %v1591, 3
    %v1617 = vrot.slane %v1596, 2
    %v1618 = vsel %vm1602, %v1617, %v1616
    %1619 = vrot.lane.b32.xlu0 %v1618, 96
    %v1620 = vpop.permute.xlu0 %1619
    %v1622 = vrot.slane %v1591, 4
    %v1623 = vrot.slane %v1596, 3
    %v1624 = vsel %vm1602, %v1623, %v1622
    %v1626 = vrot.slane %v1591, 5
    %v1627 = vrot.slane %v1596, 4
    %v1628 = vsel %vm1602, %v1627, %v1626
    %1629 = vrot.lane.b32.xlu0 %v1628, 32
    %v1630 = vpop.permute.xlu0 %1629
    %v1632 = vrot.slane %v1591, 6
    %v1633 = vrot.slane %v1596, 5
    %v1634 = vsel %vm1602, %v1633, %v1632
    %1635 = vrot.lane.b32.xlu0 %v1634, 64
    %v1636 = vpop.permute.xlu0 %1635
    %v1638 = vrot.slane %v1591, 7
    %v1639 = vrot.slane %v1596, 6
    %v1640 = vsel %vm1602, %v1639, %v1638
    %1641 = vrot.lane.b32.xlu0 %v1640, 96
    %v1642 = vpop.permute.xlu0 %1641
    %v1644 = vsel %vm1517, %v1603, %v1608
    %vm1645 = vcmask 523264
    %v1646 = vsel %vm1645, %v1644, %v1614
    %v1647 = vsel %vm73, %v1646, %v1620
    %v1648 = vsel %vm1517, %v1624, %v1630
    %v1649 = vsel %vm1645, %v1648, %v1636
    %v1650 = vsel %vm73, %v1649, %v1642
    %v1653 = vcombine.low %v1647, %v1650
    %v1655 = vunpack.c.l.s4 1983009808
    %v1656 = vunpack.c.0.s8 %v1655
    %v1657 = vlaneseq
    %v1658 = vshrl.u32 %v1657, 7
    %v1659 = vsub.s32 %v1656, %v1658
    %v1660 = vrot.slane %v1653, %v1659
    %1662 = vst [vmem:[#allocation8] sm:$0xf] %v1660
    // Predicated region
    $region30: #{tpu_custom_call.1} parent=1 // pred_check
      _
    $region31: #{tpu_custom_call.1} parent=1 // pred_check_branch
      %1664 = sbr.rel (0) target = $region33
    $region32: #{tpu_custom_call.1} parent=1 // pred_region
      %s1666 = ssub.s32 64, 64
      %1667 = vsyncadd [#allocation4], %s1666
      %s1669 = sshll.u32 [#allocation8], 4
      %s1670 = int_to_ptr.vmem [resolvable:$true] %s1669
      %1672 = dma.vmem_to_hbm [thread:$0]  %s1670, 64, %s4, [#allocation4]
    $region33: #{tpu_custom_call.1} parent=1 // pred_fallthru
      _
    // Predicated region
    $region34: #{tpu_custom_call.1} parent=1 // pred_check
      _
    $region35: #{tpu_custom_call.1} parent=1 // pred_check_branch
      %1674 = sbr.rel (0) target = $region37
    $region36: #{tpu_custom_call.1} parent=1 // pred_region
      %1675 = dma.done [#allocation4], 64
    $region37: #{tpu_custom_call.1} parent=1 // pred_fallthru
      _
    %1676 = vsyncpa [#allocation3], 1
    %1677 = vsyncpa [#allocation6], 1
    %1678 = vsyncpa [#allocation4], 1

</llo_original>
